<compile_context>
chip_gen: v7x
topology: tpu7x:2x2x1
jax: 0.10.0
libtpu: 0.0.40
codegen_flags: <defaults>
</compile_context>

<pallas_src>
import functools

import jax
import jax.numpy as jnp
from jax.experimental import pallas as pl
from jax.experimental.pallas import tpu as pltpu

EPS = 1e-5
NEG_SLOPE = 0.2


def _round_up(x, m):
    return (x + m - 1) // m * m


def _vmem_limit_bytes():
    # ~75% of physical VMEM, capped at 100 MiB: ~48 MiB on v7x, ~96 MiB on v5e/v6e.
    cap = 64 * 1024 * 1024
    try:
        info_cap = getattr(pltpu.get_tpu_info(), "vmem_capacity_bytes", None)
        if info_cap:
            cap = int(info_cap)
    except Exception:
        pass
    return int(min(cap * 3 // 4, 100 * 1024 * 1024))


def cnn_block_kernel(w_ref, xf_ref, gb_ref, mask_ref, o_ref, *, taps, inv_p, nb):
    """One grid step = NB samples.

    w_ref   : (KK, Co_pad, C_pad)    bf16  per-tap conv weights (rows = out channels)
    xf_ref  : (NB, 4, C_pad, S_pad)  bf16  flattened stride-2 phase planes per sample
    gb_ref  : (Co_pad, 2)            f32   col 0 = gamma, col 1 = beta
    mask_ref: (1, L_pad)             f32   1.0 on valid output columns, 0.0 on garbage
    o_ref   : (NB, Co_pad, L_pad)    bf16
    """
    l_pad = o_ref.shape[-1]
    mask = mask_ref[...]                             # (1, L_pad)
    gamma = gb_ref[:, 0:1]                           # (Co_pad, 1)
    beta = gb_ref[:, 1:2]

    for n in range(nb):
        xs = xf_ref[n]                               # (4, C_pad, S_pad) bf16
        # Fused im2col: conv as KK accumulating MXU dots over shifted phase slices.
        acc = None
        for t, (p, off) in enumerate(taps):
            rhs = xs[p, :, off:off + l_pad]          # (C_pad, L_pad) bf16
            contrib = jnp.dot(w_ref[t], rhs, preferred_element_type=jnp.float32)
            acc = contrib if acc is None else acc + contrib    # (Co_pad, L_pad) f32

        # Two-pass InstanceNorm over the VMEM-resident tile (no E[x^2]-E[x]^2
        # cancellation); garbage/padded columns masked out of the statistics.
        mean = jnp.sum(acc * mask, axis=-1, keepdims=True) * inv_p
        d = (acc - mean) * mask
        var = jnp.sum(d * d, axis=-1, keepdims=True) * inv_p
        scale = gamma * jax.lax.rsqrt(var + EPS)     # gamma folded into the scale
        shift = beta - mean * scale
        y = acc * scale + shift                      # one FMA per element (f32, v5e-safe)
        o_ref[n] = jnp.where(y > 0, y, NEG_SLOPE * y).astype(o_ref.dtype)


def cnn_block_forward(x, conv_w, gamma, beta, stride=2, samples_per_step=2):
    """x: (N, C_in, H, W) NCHW f32, conv_w: (C_out, C_in, K, K).  Returns NCHW bf16."""
    N, C_in, H, W = x.shape
    C_out, _, K, _ = conv_w.shape
    assert stride == 2 and H % 2 == 0 and W % 2 == 0, "kernel assumes stride-2, even H/W"

    Hh, Wh = H // 2, W // 2
    Ho = (H - K) // stride + 1
    Wo = (W - K) // stride + 1
    P = Ho * Wo                      # true spatial count for InstanceNorm statistics
    L = Ho * Wh                      # flat output length incl. (Wh - Wo) garbage cols/row

    NB = max(1, min(samples_per_step, N))
    N_pad = _round_up(N, NB)
    C_pad = _round_up(C_in, 16)      # bf16 sublane packing
    Co_pad = _round_up(C_out, 8)
    L_pad = _round_up(L, 128)        # lane-dense output tile
    q_max = (K - 1) // 2
    S_pad = _round_up(max(Hh * Wh, q_max * Wh + q_max + L_pad), 128)

    # Space-to-depth: (N, C, H, W) -> (N, 4, C, Hh*Wh) stride-2 phase planes, in bf16
    # (cast BEFORE the transpose so the XLA intermediate is 2 B/elem).  This is the only
    # XLA-side data movement: 1x read + 1x write of x — the old im2col slab is gone.
    xb = x.astype(jnp.bfloat16)
    xp = xb.reshape(N, C_in, Hh, 2, Wh, 2).transpose(0, 3, 5, 1, 2, 4)  # (N,2,2,C,Hh,Wh)
    xf = xp.reshape(N, 4, C_in, Hh * Wh)
    xf = jnp.pad(xf, ((0, N_pad - N), (0, 0), (0, C_pad - C_in), (0, S_pad - Hh * Wh)))

    # Per-tap weights: tap t = kh*K + kw -> phase p = 2*(kh%2) + (kw%2),
    # lane offset off = (kh//2)*Wh + (kw//2).
    w_r = conv_w.transpose(2, 3, 0, 1).reshape(K * K, C_out, C_in)
    w_r = jnp.pad(w_r, ((0, 0), (0, Co_pad - C_out), (0, C_pad - C_in))).astype(jnp.bfloat16)
    taps = tuple((2 * (kh % 2) + (kw % 2), (kh // 2) * Wh + (kw // 2))
                 for kh in range(K) for kw in range(K))

    g = jnp.pad(gamma.astype(jnp.float32), (0, Co_pad - C_out), constant_values=1.0)
    b = jnp.pad(beta.astype(jnp.float32), (0, Co_pad - C_out))
    gb = jnp.stack([g, b], axis=1)                                      # (Co_pad, 2)

    lane = jnp.arange(L_pad)
    mask = ((lane < L) & (lane % Wh < Wo)).astype(jnp.float32).reshape(1, L_pad)

    kernel = functools.partial(cnn_block_kernel, taps=taps, inv_p=1.0 / P, nb=NB)

    # TODO(synk): for production resolutions (e.g. 256x256, C_in=64) add a second grid
    # axis tiling the flat spatial axis ("arbitrary") with cross-tile two-pass
    # InstanceNorm (s1/s2 scratch + finalize pass), so per-step VMEM stays under the
    # v7x 64 MiB cap.
    out = pl.pallas_call(
        kernel,
        out_shape=jax.ShapeDtypeStruct((N_pad, Co_pad, L_pad), jnp.bfloat16),
        grid_spec=pltpu.PrefetchScalarGridSpec(
            num_scalar_prefetch=0,
            grid=(N_pad // NB,),
            in_specs=[
                pl.BlockSpec((K * K, Co_pad, C_pad), lambda i: (0, 0, 0)),
                pl.BlockSpec((NB, 4, C_pad, S_pad), lambda i: (i, 0, 0, 0)),
                pl.BlockSpec((Co_pad, 2), lambda i: (0, 0)),
                pl.BlockSpec((1, L_pad), lambda i: (0, 0)),
            ],
            out_specs=pl.BlockSpec((NB, Co_pad, L_pad), lambda i: (i, 0, 0)),
        ),
        compiler_params=pltpu.CompilerParams(
            dimension_semantics=("parallel",),   # >=2 steps shard across v7x's 2 TCs
            vmem_limit_bytes=_vmem_limit_bytes(),
        ),
    )(w_r, xf, gb, mask)

    # Crop batch/channel padding and the garbage columns (row length Wh -> Wo).
    # In a fused pipeline the padded (N, Co_pad, L_pad) bf16 layout would be handed
    # straight to the next block instead of cropping here.
    return out[:N, :C_out, :L].reshape(N, C_out, Ho, Wh)[:, :, :, :Wo]


def _reference(x, conv_w, gamma, beta, stride):
    conv = jax.lax.conv_general_dilated(
        x, conv_w, window_strides=(stride, stride), padding="VALID",
        dimension_numbers=("NCHW", "OIHW", "NCHW"))
    mean = jnp.mean(conv, axis=(2, 3), keepdims=True)
    var = jnp.mean((conv - mean) ** 2, axis=(2, 3), keepdims=True)
    xn = (conv - mean) * jax.lax.rsqrt(var + EPS)
    y = xn * gamma.reshape(1, -1, 1, 1) + beta.reshape(1, -1, 1, 1)
    return jnp.where(y > 0, y, NEG_SLOPE * y)


if __name__ == "__main__":
    key = jax.random.PRNGKey(0)
    k_x, k_w = jax.random.split(key)

    N, C_in, H, W = 2, 4, 16, 16
    C_out, K, stride = 8, 4, 2

    x = jax.random.normal(k_x, (N, C_in, H, W), dtype=jnp.float32)
    conv_w = 0.05 * jax.random.normal(k_w, (C_out, C_in, K, K), dtype=jnp.float32)
    # PyTorch InstanceNorm2d(affine=True) default init: gamma=1, beta=0.
    gamma = jnp.ones((C_out,), dtype=jnp.float32)
    beta = jnp.zeros((C_out,), dtype=jnp.float32)

    y = cnn_block_forward(x, conv_w, gamma, beta, stride=stride, samples_per_step=2)
    jax.block_until_ready(y)

    Ho = (H - K) // stride + 1
    Wo = (W - K) // stride + 1
    assert y.shape == (N, C_out, Ho, Wo)

    # bf16 MXU operands + bf16 output store are intentional (HBM-bound kernel);
    # expected deviation from the f32 reference is at the few-1e-2 level.
    ref = _reference(x, conv_w, gamma, beta, stride)
    err = float(jnp.max(jnp.abs(y.astype(jnp.float32) - ref)))
    assert err < 7.5e-2, f"max abs err {err}"
    print("KERNEL_OK")
</pallas_src>

<mosaic_0001>
module attributes {stable_mosaic.version = 11 : i64} {
  func.func @cnn_block_kernel(%arg0: i32, %arg1: memref<16x8x16xbf16, #tpu.memory_space<vmem>>, %arg2: memref<2x4x16x256xbf16, #tpu.memory_space<vmem>>, %arg3: memref<8x2xf32, #tpu.memory_space<vmem>>, %arg4: memref<1x128xf32, #tpu.memory_space<vmem>>, %arg5: memref<2x8x128xbf16, #tpu.memory_space<vmem>>) attributes {dimension_semantics = [#tpu.dimension_semantics<parallel>], iteration_bounds = array<i64: 1>, scalar_prefetch = 0 : i64, scratch_operands = 0 : i64, tpu.core_type = #tpu.core_type<tc>, window_params = [{pipeline_mode = #tpu.pipeline_mode<synchronous>, transform_indices = @transform_0, window_bounds = array<i64: 16, 8, 16>}, {transform_indices = @transform_1, window_bounds = array<i64: 2, 4, 16, 256>}, {pipeline_mode = #tpu.pipeline_mode<synchronous>, transform_indices = @transform_2, window_bounds = array<i64: 8, 2>}, {pipeline_mode = #tpu.pipeline_mode<synchronous>, transform_indices = @transform_3, window_bounds = array<i64: 1, 128>}, {transform_indices = @transform_4, window_bounds = array<i64: 2, 8, 128>}]} {
    %c0 = arith.constant 0 : index
    %c0_0 = arith.constant 0 : index
    %0 = vector.load %arg4[%c0, %c0_0] : memref<1x128xf32, #tpu.memory_space<vmem>>, vector<1x128xf32>
    %c0_1 = arith.constant 0 : index
    %c0_2 = arith.constant 0 : index
    %1 = vector.load %arg3[%c0_1, %c0_2] : memref<8x2xf32, #tpu.memory_space<vmem>>, vector<8x1xf32>
    %c0_3 = arith.constant 0 : index
    %c1 = arith.constant 1 : index
    %2 = vector.load %arg3[%c0_3, %c1] : memref<8x2xf32, #tpu.memory_space<vmem>>, vector<8x1xf32>
    %c0_4 = arith.constant 0 : index
    %c0_5 = arith.constant 0 : index
    %c0_6 = arith.constant 0 : index
    %c0_7 = arith.constant 0 : index
    %3 = vector.load %arg2[%c0_4, %c0_5, %c0_6, %c0_7] : memref<2x4x16x256xbf16, #tpu.memory_space<vmem>>, vector<1x4x16x256xbf16>
    %4 = vector.shape_cast %3 : vector<1x4x16x256xbf16> to vector<4x16x256xbf16>
    %5 = vector.extract_strided_slice %4 {offsets = [0, 0, 0], sizes = [1, 16, 128], strides = [1, 1, 1]} : vector<4x16x256xbf16> to vector<1x16x128xbf16>
    %6 = vector.shape_cast %5 : vector<1x16x128xbf16> to vector<16x128xbf16>
    %c0_8 = arith.constant 0 : index
    %c0_9 = arith.constant 0 : index
    %c0_10 = arith.constant 0 : index
    %7 = vector.load %arg1[%c0_8, %c0_9, %c0_10] : memref<16x8x16xbf16, #tpu.memory_space<vmem>>, vector<1x8x16xbf16>
    %8 = vector.shape_cast %7 : vector<1x8x16xbf16> to vector<8x16xbf16>
    %cst = arith.constant dense<0.000000e+00> : vector<8x128xf32>
    %9 = tpu.matmul %8, %6, %cst {dimension_numbers = #tpu.dot_dimension_numbers<[1], [0], [0], [1], [0, 0, 1, 1], [], []>} : vector<8x16xbf16>, vector<16x128xbf16>, vector<8x128xf32> -> vector<8x128xf32>
    %10 = vector.extract_strided_slice %4 {offsets = [1, 0, 0], sizes = [1, 16, 128], strides = [1, 1, 1]} : vector<4x16x256xbf16> to vector<1x16x128xbf16>
    %11 = vector.shape_cast %10 : vector<1x16x128xbf16> to vector<16x128xbf16>
    %c1_11 = arith.constant 1 : index
    %c0_12 = arith.constant 0 : index
    %c0_13 = arith.constant 0 : index
    %12 = vector.load %arg1[%c1_11, %c0_12, %c0_13] : memref<16x8x16xbf16, #tpu.memory_space<vmem>>, vector<1x8x16xbf16>
    %13 = vector.shape_cast %12 : vector<1x8x16xbf16> to vector<8x16xbf16>
    %cst_14 = arith.constant dense<0.000000e+00> : vector<8x128xf32>
    %14 = tpu.matmul %13, %11, %cst_14 {dimension_numbers = #tpu.dot_dimension_numbers<[1], [0], [0], [1], [0, 0, 1, 1], [], []>} : vector<8x16xbf16>, vector<16x128xbf16>, vector<8x128xf32> -> vector<8x128xf32>
    %15 = arith.addf %9, %14 : vector<8x128xf32>
    %16 = vector.extract_strided_slice %4 {offsets = [0, 0, 1], sizes = [1, 16, 128], strides = [1, 1, 1]} : vector<4x16x256xbf16> to vector<1x16x128xbf16>
    %17 = vector.shape_cast %16 : vector<1x16x128xbf16> to vector<16x128xbf16>
    %c2 = arith.constant 2 : index
    %c0_15 = arith.constant 0 : index
    %c0_16 = arith.constant 0 : index
    %18 = vector.load %arg1[%c2, %c0_15, %c0_16] : memref<16x8x16xbf16, #tpu.memory_space<vmem>>, vector<1x8x16xbf16>
    %19 = vector.shape_cast %18 : vector<1x8x16xbf16> to vector<8x16xbf16>
    %cst_17 = arith.constant dense<0.000000e+00> : vector<8x128xf32>
    %20 = tpu.matmul %19, %17, %cst_17 {dimension_numbers = #tpu.dot_dimension_numbers<[1], [0], [0], [1], [0, 0, 1, 1], [], []>} : vector<8x16xbf16>, vector<16x128xbf16>, vector<8x128xf32> -> vector<8x128xf32>
    %21 = arith.addf %15, %20 : vector<8x128xf32>
    %22 = vector.extract_strided_slice %4 {offsets = [1, 0, 1], sizes = [1, 16, 128], strides = [1, 1, 1]} : vector<4x16x256xbf16> to vector<1x16x128xbf16>
    %23 = vector.shape_cast %22 : vector<1x16x128xbf16> to vector<16x128xbf16>
    %c3 = arith.constant 3 : index
    %c0_18 = arith.constant 0 : index
    %c0_19 = arith.constant 0 : index
    %24 = vector.load %arg1[%c3, %c0_18, %c0_19] : memref<16x8x16xbf16, #tpu.memory_space<vmem>>, vector<1x8x16xbf16>
    %25 = vector.shape_cast %24 : vector<1x8x16xbf16> to vector<8x16xbf16>
    %cst_20 = arith.constant dense<0.000000e+00> : vector<8x128xf32>
    %26 = tpu.matmul %25, %23, %cst_20 {dimension_numbers = #tpu.dot_dimension_numbers<[1], [0], [0], [1], [0, 0, 1, 1], [], []>} : vector<8x16xbf16>, vector<16x128xbf16>, vector<8x128xf32> -> vector<8x128xf32>
    %27 = arith.addf %21, %26 : vector<8x128xf32>
    %28 = vector.extract_strided_slice %4 {offsets = [2, 0, 0], sizes = [1, 16, 128], strides = [1, 1, 1]} : vector<4x16x256xbf16> to vector<1x16x128xbf16>
    %29 = vector.shape_cast %28 : vector<1x16x128xbf16> to vector<16x128xbf16>
    %c4 = arith.constant 4 : index
    %c0_21 = arith.constant 0 : index
    %c0_22 = arith.constant 0 : index
    %30 = vector.load %arg1[%c4, %c0_21, %c0_22] : memref<16x8x16xbf16, #tpu.memory_space<vmem>>, vector<1x8x16xbf16>
    %31 = vector.shape_cast %30 : vector<1x8x16xbf16> to vector<8x16xbf16>
    %cst_23 = arith.constant dense<0.000000e+00> : vector<8x128xf32>
    %32 = tpu.matmul %31, %29, %cst_23 {dimension_numbers = #tpu.dot_dimension_numbers<[1], [0], [0], [1], [0, 0, 1, 1], [], []>} : vector<8x16xbf16>, vector<16x128xbf16>, vector<8x128xf32> -> vector<8x128xf32>
    %33 = arith.addf %27, %32 : vector<8x128xf32>
    %34 = vector.extract_strided_slice %4 {offsets = [3, 0, 0], sizes = [1, 16, 128], strides = [1, 1, 1]} : vector<4x16x256xbf16> to vector<1x16x128xbf16>
    %35 = vector.shape_cast %34 : vector<1x16x128xbf16> to vector<16x128xbf16>
    %c5 = arith.constant 5 : index
    %c0_24 = arith.constant 0 : index
    %c0_25 = arith.constant 0 : index
    %36 = vector.load %arg1[%c5, %c0_24, %c0_25] : memref<16x8x16xbf16, #tpu.memory_space<vmem>>, vector<1x8x16xbf16>
    %37 = vector.shape_cast %36 : vector<1x8x16xbf16> to vector<8x16xbf16>
    %cst_26 = arith.constant dense<0.000000e+00> : vector<8x128xf32>
    %38 = tpu.matmul %37, %35, %cst_26 {dimension_numbers = #tpu.dot_dimension_numbers<[1], [0], [0], [1], [0, 0, 1, 1], [], []>} : vector<8x16xbf16>, vector<16x128xbf16>, vector<8x128xf32> -> vector<8x128xf32>
    %39 = arith.addf %33, %38 : vector<8x128xf32>
    %40 = vector.extract_strided_slice %4 {offsets = [2, 0, 1], sizes = [1, 16, 128], strides = [1, 1, 1]} : vector<4x16x256xbf16> to vector<1x16x128xbf16>
    %41 = vector.shape_cast %40 : vector<1x16x128xbf16> to vector<16x128xbf16>
    %c6 = arith.constant 6 : index
    %c0_27 = arith.constant 0 : index
    %c0_28 = arith.constant 0 : index
    %42 = vector.load %arg1[%c6, %c0_27, %c0_28] : memref<16x8x16xbf16, #tpu.memory_space<vmem>>, vector<1x8x16xbf16>
    %43 = vector.shape_cast %42 : vector<1x8x16xbf16> to vector<8x16xbf16>
    %cst_29 = arith.constant dense<0.000000e+00> : vector<8x128xf32>
    %44 = tpu.matmul %43, %41, %cst_29 {dimension_numbers = #tpu.dot_dimension_numbers<[1], [0], [0], [1], [0, 0, 1, 1], [], []>} : vector<8x16xbf16>, vector<16x128xbf16>, vector<8x128xf32> -> vector<8x128xf32>
    %45 = arith.addf %39, %44 : vector<8x128xf32>
    %46 = vector.extract_strided_slice %4 {offsets = [3, 0, 1], sizes = [1, 16, 128], strides = [1, 1, 1]} : vector<4x16x256xbf16> to vector<1x16x128xbf16>
    %47 = vector.shape_cast %46 : vector<1x16x128xbf16> to vector<16x128xbf16>
    %c7 = arith.constant 7 : index
    %c0_30 = arith.constant 0 : index
    %c0_31 = arith.constant 0 : index
    %48 = vector.load %arg1[%c7, %c0_30, %c0_31] : memref<16x8x16xbf16, #tpu.memory_space<vmem>>, vector<1x8x16xbf16>
    %49 = vector.shape_cast %48 : vector<1x8x16xbf16> to vector<8x16xbf16>
    %cst_32 = arith.constant dense<0.000000e+00> : vector<8x128xf32>
    %50 = tpu.matmul %49, %47, %cst_32 {dimension_numbers = #tpu.dot_dimension_numbers<[1], [0], [0], [1], [0, 0, 1, 1], [], []>} : vector<8x16xbf16>, vector<16x128xbf16>, vector<8x128xf32> -> vector<8x128xf32>
    %51 = arith.addf %45, %50 : vector<8x128xf32>
    %52 = vector.extract_strided_slice %4 {offsets = [0, 0, 8], sizes = [1, 16, 128], strides = [1, 1, 1]} : vector<4x16x256xbf16> to vector<1x16x128xbf16>
    %53 = vector.shape_cast %52 : vector<1x16x128xbf16> to vector<16x128xbf16>
    %c8 = arith.constant 8 : index
    %c0_33 = arith.constant 0 : index
    %c0_34 = arith.constant 0 : index
    %54 = vector.load %arg1[%c8, %c0_33, %c0_34] : memref<16x8x16xbf16, #tpu.memory_space<vmem>>, vector<1x8x16xbf16>
    %55 = vector.shape_cast %54 : vector<1x8x16xbf16> to vector<8x16xbf16>
    %cst_35 = arith.constant dense<0.000000e+00> : vector<8x128xf32>
    %56 = tpu.matmul %55, %53, %cst_35 {dimension_numbers = #tpu.dot_dimension_numbers<[1], [0], [0], [1], [0, 0, 1, 1], [], []>} : vector<8x16xbf16>, vector<16x128xbf16>, vector<8x128xf32> -> vector<8x128xf32>
    %57 = arith.addf %51, %56 : vector<8x128xf32>
    %58 = vector.extract_strided_slice %4 {offsets = [1, 0, 8], sizes = [1, 16, 128], strides = [1, 1, 1]} : vector<4x16x256xbf16> to vector<1x16x128xbf16>
    %59 = vector.shape_cast %58 : vector<1x16x128xbf16> to vector<16x128xbf16>
    %c9 = arith.constant 9 : index
    %c0_36 = arith.constant 0 : index
    %c0_37 = arith.constant 0 : index
    %60 = vector.load %arg1[%c9, %c0_36, %c0_37] : memref<16x8x16xbf16, #tpu.memory_space<vmem>>, vector<1x8x16xbf16>
    %61 = vector.shape_cast %60 : vector<1x8x16xbf16> to vector<8x16xbf16>
    %cst_38 = arith.constant dense<0.000000e+00> : vector<8x128xf32>
    %62 = tpu.matmul %61, %59, %cst_38 {dimension_numbers = #tpu.dot_dimension_numbers<[1], [0], [0], [1], [0, 0, 1, 1], [], []>} : vector<8x16xbf16>, vector<16x128xbf16>, vector<8x128xf32> -> vector<8x128xf32>
    %63 = arith.addf %57, %62 : vector<8x128xf32>
    %64 = vector.extract_strided_slice %4 {offsets = [0, 0, 9], sizes = [1, 16, 128], strides = [1, 1, 1]} : vector<4x16x256xbf16> to vector<1x16x128xbf16>
    %65 = vector.shape_cast %64 : vector<1x16x128xbf16> to vector<16x128xbf16>
    %c10 = arith.constant 10 : index
    %c0_39 = arith.constant 0 : index
    %c0_40 = arith.constant 0 : index
    %66 = vector.load %arg1[%c10, %c0_39, %c0_40] : memref<16x8x16xbf16, #tpu.memory_space<vmem>>, vector<1x8x16xbf16>
    %67 = vector.shape_cast %66 : vector<1x8x16xbf16> to vector<8x16xbf16>
    %cst_41 = arith.constant dense<0.000000e+00> : vector<8x128xf32>
    %68 = tpu.matmul %67, %65, %cst_41 {dimension_numbers = #tpu.dot_dimension_numbers<[1], [0], [0], [1], [0, 0, 1, 1], [], []>} : vector<8x16xbf16>, vector<16x128xbf16>, vector<8x128xf32> -> vector<8x128xf32>
    %69 = arith.addf %63, %68 : vector<8x128xf32>
    %70 = vector.extract_strided_slice %4 {offsets = [1, 0, 9], sizes = [1, 16, 128], strides = [1, 1, 1]} : vector<4x16x256xbf16> to vector<1x16x128xbf16>
    %71 = vector.shape_cast %70 : vector<1x16x128xbf16> to vector<16x128xbf16>
    %c11 = arith.constant 11 : index
    %c0_42 = arith.constant 0 : index
    %c0_43 = arith.constant 0 : index
    %72 = vector.load %arg1[%c11, %c0_42, %c0_43] : memref<16x8x16xbf16, #tpu.memory_space<vmem>>, vector<1x8x16xbf16>
    %73 = vector.shape_cast %72 : vector<1x8x16xbf16> to vector<8x16xbf16>
    %cst_44 = arith.constant dense<0.000000e+00> : vector<8x128xf32>
    %74 = tpu.matmul %73, %71, %cst_44 {dimension_numbers = #tpu.dot_dimension_numbers<[1], [0], [0], [1], [0, 0, 1, 1], [], []>} : vector<8x16xbf16>, vector<16x128xbf16>, vector<8x128xf32> -> vector<8x128xf32>
    %75 = arith.addf %69, %74 : vector<8x128xf32>
    %76 = vector.extract_strided_slice %4 {offsets = [2, 0, 8], sizes = [1, 16, 128], strides = [1, 1, 1]} : vector<4x16x256xbf16> to vector<1x16x128xbf16>
    %77 = vector.shape_cast %76 : vector<1x16x128xbf16> to vector<16x128xbf16>
    %c12 = arith.constant 12 : index
    %c0_45 = arith.constant 0 : index
    %c0_46 = arith.constant 0 : index
    %78 = vector.load %arg1[%c12, %c0_45, %c0_46] : memref<16x8x16xbf16, #tpu.memory_space<vmem>>, vector<1x8x16xbf16>
    %79 = vector.shape_cast %78 : vector<1x8x16xbf16> to vector<8x16xbf16>
    %cst_47 = arith.constant dense<0.000000e+00> : vector<8x128xf32>
    %80 = tpu.matmul %79, %77, %cst_47 {dimension_numbers = #tpu.dot_dimension_numbers<[1], [0], [0], [1], [0, 0, 1, 1], [], []>} : vector<8x16xbf16>, vector<16x128xbf16>, vector<8x128xf32> -> vector<8x128xf32>
    %81 = arith.addf %75, %80 : vector<8x128xf32>
    %82 = vector.extract_strided_slice %4 {offsets = [3, 0, 8], sizes = [1, 16, 128], strides = [1, 1, 1]} : vector<4x16x256xbf16> to vector<1x16x128xbf16>
    %83 = vector.shape_cast %82 : vector<1x16x128xbf16> to vector<16x128xbf16>
    %c13 = arith.constant 13 : index
    %c0_48 = arith.constant 0 : index
    %c0_49 = arith.constant 0 : index
    %84 = vector.load %arg1[%c13, %c0_48, %c0_49] : memref<16x8x16xbf16, #tpu.memory_space<vmem>>, vector<1x8x16xbf16>
    %85 = vector.shape_cast %84 : vector<1x8x16xbf16> to vector<8x16xbf16>
    %cst_50 = arith.constant dense<0.000000e+00> : vector<8x128xf32>
    %86 = tpu.matmul %85, %83, %cst_50 {dimension_numbers = #tpu.dot_dimension_numbers<[1], [0], [0], [1], [0, 0, 1, 1], [], []>} : vector<8x16xbf16>, vector<16x128xbf16>, vector<8x128xf32> -> vector<8x128xf32>
    %87 = arith.addf %81, %86 : vector<8x128xf32>
    %88 = vector.extract_strided_slice %4 {offsets = [2, 0, 9], sizes = [1, 16, 128], strides = [1, 1, 1]} : vector<4x16x256xbf16> to vector<1x16x128xbf16>
    %89 = vector.shape_cast %88 : vector<1x16x128xbf16> to vector<16x128xbf16>
    %c14 = arith.constant 14 : index
    %c0_51 = arith.constant 0 : index
    %c0_52 = arith.constant 0 : index
    %90 = vector.load %arg1[%c14, %c0_51, %c0_52] : memref<16x8x16xbf16, #tpu.memory_space<vmem>>, vector<1x8x16xbf16>
    %91 = vector.shape_cast %90 : vector<1x8x16xbf16> to vector<8x16xbf16>
    %cst_53 = arith.constant dense<0.000000e+00> : vector<8x128xf32>
    %92 = tpu.matmul %91, %89, %cst_53 {dimension_numbers = #tpu.dot_dimension_numbers<[1], [0], [0], [1], [0, 0, 1, 1], [], []>} : vector<8x16xbf16>, vector<16x128xbf16>, vector<8x128xf32> -> vector<8x128xf32>
    %93 = arith.addf %87, %92 : vector<8x128xf32>
    %94 = vector.extract_strided_slice %4 {offsets = [3, 0, 9], sizes = [1, 16, 128], strides = [1, 1, 1]} : vector<4x16x256xbf16> to vector<1x16x128xbf16>
    %95 = vector.shape_cast %94 : vector<1x16x128xbf16> to vector<16x128xbf16>
    %c15 = arith.constant 15 : index
    %c0_54 = arith.constant 0 : index
    %c0_55 = arith.constant 0 : index
    %96 = vector.load %arg1[%c15, %c0_54, %c0_55] : memref<16x8x16xbf16, #tpu.memory_space<vmem>>, vector<1x8x16xbf16>
    %97 = vector.shape_cast %96 : vector<1x8x16xbf16> to vector<8x16xbf16>
    %cst_56 = arith.constant dense<0.000000e+00> : vector<8x128xf32>
    %98 = tpu.matmul %97, %95, %cst_56 {dimension_numbers = #tpu.dot_dimension_numbers<[1], [0], [0], [1], [0, 0, 1, 1], [], []>} : vector<8x16xbf16>, vector<16x128xbf16>, vector<8x128xf32> -> vector<8x128xf32>
    %99 = arith.addf %93, %98 : vector<8x128xf32>
    %100 = vector.broadcast %0 : vector<1x128xf32> to vector<8x128xf32>
    %101 = arith.mulf %99, %100 : vector<8x128xf32>
    %cst_57 = arith.constant dense<0.000000e+00> : vector<8xf32>
    %102 = vector.multi_reduction <add>, %101, %cst_57 [1] : vector<8x128xf32> to vector<8xf32>
    %103 = vector.shape_cast %102 : vector<8xf32> to vector<8x1xf32>
    %cst_58 = arith.constant 0.0204081628 : f32
    %104 = vector.broadcast %cst_58 : f32 to vector<8x1xf32>
    %105 = arith.mulf %103, %104 : vector<8x1xf32>
    %106 = vector.broadcast %105 : vector<8x1xf32> to vector<8x128xf32>
    %107 = arith.subf %99, %106 : vector<8x128xf32>
    %108 = vector.broadcast %0 : vector<1x128xf32> to vector<8x128xf32>
    %109 = arith.mulf %107, %108 : vector<8x128xf32>
    %110 = arith.mulf %109, %109 : vector<8x128xf32>
    %cst_59 = arith.constant dense<0.000000e+00> : vector<8xf32>
    %111 = vector.multi_reduction <add>, %110, %cst_59 [1] : vector<8x128xf32> to vector<8xf32>
    %112 = vector.shape_cast %111 : vector<8xf32> to vector<8x1xf32>
    %cst_60 = arith.constant 0.0204081628 : f32
    %113 = vector.broadcast %cst_60 : f32 to vector<8x1xf32>
    %114 = arith.mulf %112, %113 : vector<8x1xf32>
    %cst_61 = arith.constant 9.99999974E-6 : f32
    %115 = vector.broadcast %cst_61 : f32 to vector<8x1xf32>
    %116 = arith.addf %114, %115 : vector<8x1xf32>
    %117 = math.rsqrt %116 : vector<8x1xf32>
    %118 = arith.mulf %1, %117 : vector<8x1xf32>
    %119 = arith.mulf %105, %118 : vector<8x1xf32>
    %120 = arith.subf %2, %119 : vector<8x1xf32>
    %121 = vector.broadcast %118 : vector<8x1xf32> to vector<8x128xf32>
    %122 = arith.mulf %99, %121 : vector<8x128xf32>
    %123 = vector.broadcast %120 : vector<8x1xf32> to vector<8x128xf32>
    %124 = arith.addf %122, %123 : vector<8x128xf32>
    %cst_62 = arith.constant 0.000000e+00 : f32
    %125 = vector.broadcast %cst_62 : f32 to vector<8x128xf32>
    %126 = arith.cmpf ogt, %124, %125 : vector<8x128xf32>
    %cst_63 = arith.constant 2.000000e-01 : f32
    %127 = vector.broadcast %cst_63 : f32 to vector<8x128xf32>
    %128 = arith.mulf %127, %124 : vector<8x128xf32>
    %129 = arith.select %126, %124, %128 : vector<8x128xi1>, vector<8x128xf32>
    %130 = arith.truncf %129 : vector<8x128xf32> to vector<8x128xbf16>
    %c0_64 = arith.constant 0 : index
    %c0_65 = arith.constant 0 : index
    %c0_66 = arith.constant 0 : index
    %131 = vector.load %arg5[%c0_64, %c0_65, %c0_66] : memref<2x8x128xbf16, #tpu.memory_space<vmem>>, vector<1x8x128xbf16>
    %132 = vector.shape_cast %131 : vector<1x8x128xbf16> to vector<8x128xbf16>
    %133 = vector.shape_cast %130 : vector<8x128xbf16> to vector<1x8x128xbf16>
    tpu.vector_store %arg5[%c0_64, %c0_65, %c0_66], %133 {strides = array<i32>} : memref<2x8x128xbf16, #tpu.memory_space<vmem>>, vector<1x8x128xbf16>,
    %c1_67 = arith.constant 1 : index
    %c0_68 = arith.constant 0 : index
    %c0_69 = arith.constant 0 : index
    %c0_70 = arith.constant 0 : index
    %134 = vector.load %arg2[%c1_67, %c0_68, %c0_69, %c0_70] : memref<2x4x16x256xbf16, #tpu.memory_space<vmem>>, vector<1x4x16x256xbf16>
    %135 = vector.shape_cast %134 : vector<1x4x16x256xbf16> to vector<4x16x256xbf16>
    %136 = vector.extract_strided_slice %135 {offsets = [0, 0, 0], sizes = [1, 16, 128], strides = [1, 1, 1]} : vector<4x16x256xbf16> to vector<1x16x128xbf16>
    %137 = vector.shape_cast %136 : vector<1x16x128xbf16> to vector<16x128xbf16>
    %c0_71 = arith.constant 0 : index
    %c0_72 = arith.constant 0 : index
    %c0_73 = arith.constant 0 : index
    %138 = vector.load %arg1[%c0_71, %c0_72, %c0_73] : memref<16x8x16xbf16, #tpu.memory_space<vmem>>, vector<1x8x16xbf16>
    %139 = vector.shape_cast %138 : vector<1x8x16xbf16> to vector<8x16xbf16>
    %cst_74 = arith.constant dense<0.000000e+00> : vector<8x128xf32>
    %140 = tpu.matmul %139, %137, %cst_74 {dimension_numbers = #tpu.dot_dimension_numbers<[1], [0], [0], [1], [0, 0, 1, 1], [], []>} : vector<8x16xbf16>, vector<16x128xbf16>, vector<8x128xf32> -> vector<8x128xf32>
    %141 = vector.extract_strided_slice %135 {offsets = [1, 0, 0], sizes = [1, 16, 128], strides = [1, 1, 1]} : vector<4x16x256xbf16> to vector<1x16x128xbf16>
    %142 = vector.shape_cast %141 : vector<1x16x128xbf16> to vector<16x128xbf16>
    %c1_75 = arith.constant 1 : index
    %c0_76 = arith.constant 0 : index
    %c0_77 = arith.constant 0 : index
    %143 = vector.load %arg1[%c1_75, %c0_76, %c0_77] : memref<16x8x16xbf16, #tpu.memory_space<vmem>>, vector<1x8x16xbf16>
    %144 = vector.shape_cast %143 : vector<1x8x16xbf16> to vector<8x16xbf16>
    %cst_78 = arith.constant dense<0.000000e+00> : vector<8x128xf32>
    %145 = tpu.matmul %144, %142, %cst_78 {dimension_numbers = #tpu.dot_dimension_numbers<[1], [0], [0], [1], [0, 0, 1, 1], [], []>} : vector<8x16xbf16>, vector<16x128xbf16>, vector<8x128xf32> -> vector<8x128xf32>
    %146 = arith.addf %140, %145 : vector<8x128xf32>
    %147 = vector.extract_strided_slice %135 {offsets = [0, 0, 1], sizes = [1, 16, 128], strides = [1, 1, 1]} : vector<4x16x256xbf16> to vector<1x16x128xbf16>
    %148 = vector.shape_cast %147 : vector<1x16x128xbf16> to vector<16x128xbf16>
    %c2_79 = arith.constant 2 : index
    %c0_80 = arith.constant 0 : index
    %c0_81 = arith.constant 0 : index
    %149 = vector.load %arg1[%c2_79, %c0_80, %c0_81] : memref<16x8x16xbf16, #tpu.memory_space<vmem>>, vector<1x8x16xbf16>
    %150 = vector.shape_cast %149 : vector<1x8x16xbf16> to vector<8x16xbf16>
    %cst_82 = arith.constant dense<0.000000e+00> : vector<8x128xf32>
    %151 = tpu.matmul %150, %148, %cst_82 {dimension_numbers = #tpu.dot_dimension_numbers<[1], [0], [0], [1], [0, 0, 1, 1], [], []>} : vector<8x16xbf16>, vector<16x128xbf16>, vector<8x128xf32> -> vector<8x128xf32>
    %152 = arith.addf %146, %151 : vector<8x128xf32>
    %153 = vector.extract_strided_slice %135 {offsets = [1, 0, 1], sizes = [1, 16, 128], strides = [1, 1, 1]} : vector<4x16x256xbf16> to vector<1x16x128xbf16>
    %154 = vector.shape_cast %153 : vector<1x16x128xbf16> to vector<16x128xbf16>
    %c3_83 = arith.constant 3 : index
    %c0_84 = arith.constant 0 : index
    %c0_85 = arith.constant 0 : index
    %155 = vector.load %arg1[%c3_83, %c0_84, %c0_85] : memref<16x8x16xbf16, #tpu.memory_space<vmem>>, vector<1x8x16xbf16>
    %156 = vector.shape_cast %155 : vector<1x8x16xbf16> to vector<8x16xbf16>
    %cst_86 = arith.constant dense<0.000000e+00> : vector<8x128xf32>
    %157 = tpu.matmul %156, %154, %cst_86 {dimension_numbers = #tpu.dot_dimension_numbers<[1], [0], [0], [1], [0, 0, 1, 1], [], []>} : vector<8x16xbf16>, vector<16x128xbf16>, vector<8x128xf32> -> vector<8x128xf32>
    %158 = arith.addf %152, %157 : vector<8x128xf32>
    %159 = vector.extract_strided_slice %135 {offsets = [2, 0, 0], sizes = [1, 16, 128], strides = [1, 1, 1]} : vector<4x16x256xbf16> to vector<1x16x128xbf16>
    %160 = vector.shape_cast %159 : vector<1x16x128xbf16> to vector<16x128xbf16>
    %c4_87 = arith.constant 4 : index
    %c0_88 = arith.constant 0 : index
    %c0_89 = arith.constant 0 : index
    %161 = vector.load %arg1[%c4_87, %c0_88, %c0_89] : memref<16x8x16xbf16, #tpu.memory_space<vmem>>, vector<1x8x16xbf16>
    %162 = vector.shape_cast %161 : vector<1x8x16xbf16> to vector<8x16xbf16>
    %cst_90 = arith.constant dense<0.000000e+00> : vector<8x128xf32>
    %163 = tpu.matmul %162, %160, %cst_90 {dimension_numbers = #tpu.dot_dimension_numbers<[1], [0], [0], [1], [0, 0, 1, 1], [], []>} : vector<8x16xbf16>, vector<16x128xbf16>, vector<8x128xf32> -> vector<8x128xf32>
    %164 = arith.addf %158, %163 : vector<8x128xf32>
    %165 = vector.extract_strided_slice %135 {offsets = [3, 0, 0], sizes = [1, 16, 128], strides = [1, 1, 1]} : vector<4x16x256xbf16> to vector<1x16x128xbf16>
    %166 = vector.shape_cast %165 : vector<1x16x128xbf16> to vector<16x128xbf16>
    %c5_91 = arith.constant 5 : index
    %c0_92 = arith.constant 0 : index
    %c0_93 = arith.constant 0 : index
    %167 = vector.load %arg1[%c5_91, %c0_92, %c0_93] : memref<16x8x16xbf16, #tpu.memory_space<vmem>>, vector<1x8x16xbf16>
    %168 = vector.shape_cast %167 : vector<1x8x16xbf16> to vector<8x16xbf16>
    %cst_94 = arith.constant dense<0.000000e+00> : vector<8x128xf32>
    %169 = tpu.matmul %168, %166, %cst_94 {dimension_numbers = #tpu.dot_dimension_numbers<[1], [0], [0], [1], [0, 0, 1, 1], [], []>} : vector<8x16xbf16>, vector<16x128xbf16>, vector<8x128xf32> -> vector<8x128xf32>
    %170 = arith.addf %164, %169 : vector<8x128xf32>
    %171 = vector.extract_strided_slice %135 {offsets = [2, 0, 1], sizes = [1, 16, 128], strides = [1, 1, 1]} : vector<4x16x256xbf16> to vector<1x16x128xbf16>
    %172 = vector.shape_cast %171 : vector<1x16x128xbf16> to vector<16x128xbf16>
    %c6_95 = arith.constant 6 : index
    %c0_96 = arith.constant 0 : index
    %c0_97 = arith.constant 0 : index
    %173 = vector.load %arg1[%c6_95, %c0_96, %c0_97] : memref<16x8x16xbf16, #tpu.memory_space<vmem>>, vector<1x8x16xbf16>
    %174 = vector.shape_cast %173 : vector<1x8x16xbf16> to vector<8x16xbf16>
    %cst_98 = arith.constant dense<0.000000e+00> : vector<8x128xf32>
    %175 = tpu.matmul %174, %172, %cst_98 {dimension_numbers = #tpu.dot_dimension_numbers<[1], [0], [0], [1], [0, 0, 1, 1], [], []>} : vector<8x16xbf16>, vector<16x128xbf16>, vector<8x128xf32> -> vector<8x128xf32>
    %176 = arith.addf %170, %175 : vector<8x128xf32>
    %177 = vector.extract_strided_slice %135 {offsets = [3, 0, 1], sizes = [1, 16, 128], strides = [1, 1, 1]} : vector<4x16x256xbf16> to vector<1x16x128xbf16>
    %178 = vector.shape_cast %177 : vector<1x16x128xbf16> to vector<16x128xbf16>
    %c7_99 = arith.constant 7 : index
    %c0_100 = arith.constant 0 : index
    %c0_101 = arith.constant 0 : index
    %179 = vector.load %arg1[%c7_99, %c0_100, %c0_101] : memref<16x8x16xbf16, #tpu.memory_space<vmem>>, vector<1x8x16xbf16>
    %180 = vector.shape_cast %179 : vector<1x8x16xbf16> to vector<8x16xbf16>
    %cst_102 = arith.constant dense<0.000000e+00> : vector<8x128xf32>
    %181 = tpu.matmul %180, %178, %cst_102 {dimension_numbers = #tpu.dot_dimension_numbers<[1], [0], [0], [1], [0, 0, 1, 1], [], []>} : vector<8x16xbf16>, vector<16x128xbf16>, vector<8x128xf32> -> vector<8x128xf32>
    %182 = arith.addf %176, %181 : vector<8x128xf32>
    %183 = vector.extract_strided_slice %135 {offsets = [0, 0, 8], sizes = [1, 16, 128], strides = [1, 1, 1]} : vector<4x16x256xbf16> to vector<1x16x128xbf16>
    %184 = vector.shape_cast %183 : vector<1x16x128xbf16> to vector<16x128xbf16>
    %c8_103 = arith.constant 8 : index
    %c0_104 = arith.constant 0 : index
    %c0_105 = arith.constant 0 : index
    %185 = vector.load %arg1[%c8_103, %c0_104, %c0_105] : memref<16x8x16xbf16, #tpu.memory_space<vmem>>, vector<1x8x16xbf16>
    %186 = vector.shape_cast %185 : vector<1x8x16xbf16> to vector<8x16xbf16>
    %cst_106 = arith.constant dense<0.000000e+00> : vector<8x128xf32>
    %187 = tpu.matmul %186, %184, %cst_106 {dimension_numbers = #tpu.dot_dimension_numbers<[1], [0], [0], [1], [0, 0, 1, 1], [], []>} : vector<8x16xbf16>, vector<16x128xbf16>, vector<8x128xf32> -> vector<8x128xf32>
    %188 = arith.addf %182, %187 : vector<8x128xf32>
    %189 = vector.extract_strided_slice %135 {offsets = [1, 0, 8], sizes = [1, 16, 128], strides = [1, 1, 1]} : vector<4x16x256xbf16> to vector<1x16x128xbf16>
    %190 = vector.shape_cast %189 : vector<1x16x128xbf16> to vector<16x128xbf16>
    %c9_107 = arith.constant 9 : index
    %c0_108 = arith.constant 0 : index
    %c0_109 = arith.constant 0 : index
    %191 = vector.load %arg1[%c9_107, %c0_108, %c0_109] : memref<16x8x16xbf16, #tpu.memory_space<vmem>>, vector<1x8x16xbf16>
    %192 = vector.shape_cast %191 : vector<1x8x16xbf16> to vector<8x16xbf16>
    %cst_110 = arith.constant dense<0.000000e+00> : vector<8x128xf32>
    %193 = tpu.matmul %192, %190, %cst_110 {dimension_numbers = #tpu.dot_dimension_numbers<[1], [0], [0], [1], [0, 0, 1, 1], [], []>} : vector<8x16xbf16>, vector<16x128xbf16>, vector<8x128xf32> -> vector<8x128xf32>
    %194 = arith.addf %188, %193 : vector<8x128xf32>
    %195 = vector.extract_strided_slice %135 {offsets = [0, 0, 9], sizes = [1, 16, 128], strides = [1, 1, 1]} : vector<4x16x256xbf16> to vector<1x16x128xbf16>
    %196 = vector.shape_cast %195 : vector<1x16x128xbf16> to vector<16x128xbf16>
    %c10_111 = arith.constant 10 : index
    %c0_112 = arith.constant 0 : index
    %c0_113 = arith.constant 0 : index
    %197 = vector.load %arg1[%c10_111, %c0_112, %c0_113] : memref<16x8x16xbf16, #tpu.memory_space<vmem>>, vector<1x8x16xbf16>
    %198 = vector.shape_cast %197 : vector<1x8x16xbf16> to vector<8x16xbf16>
    %cst_114 = arith.constant dense<0.000000e+00> : vector<8x128xf32>
    %199 = tpu.matmul %198, %196, %cst_114 {dimension_numbers = #tpu.dot_dimension_numbers<[1], [0], [0], [1], [0, 0, 1, 1], [], []>} : vector<8x16xbf16>, vector<16x128xbf16>, vector<8x128xf32> -> vector<8x128xf32>
    %200 = arith.addf %194, %199 : vector<8x128xf32>
    %201 = vector.extract_strided_slice %135 {offsets = [1, 0, 9], sizes = [1, 16, 128], strides = [1, 1, 1]} : vector<4x16x256xbf16> to vector<1x16x128xbf16>
    %202 = vector.shape_cast %201 : vector<1x16x128xbf16> to vector<16x128xbf16>
    %c11_115 = arith.constant 11 : index
    %c0_116 = arith.constant 0 : index
    %c0_117 = arith.constant 0 : index
    %203 = vector.load %arg1[%c11_115, %c0_116, %c0_117] : memref<16x8x16xbf16, #tpu.memory_space<vmem>>, vector<1x8x16xbf16>
    %204 = vector.shape_cast %203 : vector<1x8x16xbf16> to vector<8x16xbf16>
    %cst_118 = arith.constant dense<0.000000e+00> : vector<8x128xf32>
    %205 = tpu.matmul %204, %202, %cst_118 {dimension_numbers = #tpu.dot_dimension_numbers<[1], [0], [0], [1], [0, 0, 1, 1], [], []>} : vector<8x16xbf16>, vector<16x128xbf16>, vector<8x128xf32> -> vector<8x128xf32>
    %206 = arith.addf %200, %205 : vector<8x128xf32>
    %207 = vector.extract_strided_slice %135 {offsets = [2, 0, 8], sizes = [1, 16, 128], strides = [1, 1, 1]} : vector<4x16x256xbf16> to vector<1x16x128xbf16>
    %208 = vector.shape_cast %207 : vector<1x16x128xbf16> to vector<16x128xbf16>
    %c12_119 = arith.constant 12 : index
    %c0_120 = arith.constant 0 : index
    %c0_121 = arith.constant 0 : index
    %209 = vector.load %arg1[%c12_119, %c0_120, %c0_121] : memref<16x8x16xbf16, #tpu.memory_space<vmem>>, vector<1x8x16xbf16>
    %210 = vector.shape_cast %209 : vector<1x8x16xbf16> to vector<8x16xbf16>
    %cst_122 = arith.constant dense<0.000000e+00> : vector<8x128xf32>
    %211 = tpu.matmul %210, %208, %cst_122 {dimension_numbers = #tpu.dot_dimension_numbers<[1], [0], [0], [1], [0, 0, 1, 1], [], []>} : vector<8x16xbf16>, vector<16x128xbf16>, vector<8x128xf32> -> vector<8x128xf32>
    %212 = arith.addf %206, %211 : vector<8x128xf32>
    %213 = vector.extract_strided_slice %135 {offsets = [3, 0, 8], sizes = [1, 16, 128], strides = [1, 1, 1]} : vector<4x16x256xbf16> to vector<1x16x128xbf16>
    %214 = vector.shape_cast %213 : vector<1x16x128xbf16> to vector<16x128xbf16>
    %c13_123 = arith.constant 13 : index
    %c0_124 = arith.constant 0 : index
    %c0_125 = arith.constant 0 : index
    %215 = vector.load %arg1[%c13_123, %c0_124, %c0_125] : memref<16x8x16xbf16, #tpu.memory_space<vmem>>, vector<1x8x16xbf16>
    %216 = vector.shape_cast %215 : vector<1x8x16xbf16> to vector<8x16xbf16>
    %cst_126 = arith.constant dense<0.000000e+00> : vector<8x128xf32>
    %217 = tpu.matmul %216, %214, %cst_126 {dimension_numbers = #tpu.dot_dimension_numbers<[1], [0], [0], [1], [0, 0, 1, 1], [], []>} : vector<8x16xbf16>, vector<16x128xbf16>, vector<8x128xf32> -> vector<8x128xf32>
    %218 = arith.addf %212, %217 : vector<8x128xf32>
    %219 = vector.extract_strided_slice %135 {offsets = [2, 0, 9], sizes = [1, 16, 128], strides = [1, 1, 1]} : vector<4x16x256xbf16> to vector<1x16x128xbf16>
    %220 = vector.shape_cast %219 : vector<1x16x128xbf16> to vector<16x128xbf16>
    %c14_127 = arith.constant 14 : index
    %c0_128 = arith.constant 0 : index
    %c0_129 = arith.constant 0 : index
    %221 = vector.load %arg1[%c14_127, %c0_128, %c0_129] : memref<16x8x16xbf16, #tpu.memory_space<vmem>>, vector<1x8x16xbf16>
    %222 = vector.shape_cast %221 : vector<1x8x16xbf16> to vector<8x16xbf16>
    %cst_130 = arith.constant dense<0.000000e+00> : vector<8x128xf32>
    %223 = tpu.matmul %222, %220, %cst_130 {dimension_numbers = #tpu.dot_dimension_numbers<[1], [0], [0], [1], [0, 0, 1, 1], [], []>} : vector<8x16xbf16>, vector<16x128xbf16>, vector<8x128xf32> -> vector<8x128xf32>
    %224 = arith.addf %218, %223 : vector<8x128xf32>
    %225 = vector.extract_strided_slice %135 {offsets = [3, 0, 9], sizes = [1, 16, 128], strides = [1, 1, 1]} : vector<4x16x256xbf16> to vector<1x16x128xbf16>
    %226 = vector.shape_cast %225 : vector<1x16x128xbf16> to vector<16x128xbf16>
    %c15_131 = arith.constant 15 : index
    %c0_132 = arith.constant 0 : index
    %c0_133 = arith.constant 0 : index
    %227 = vector.load %arg1[%c15_131, %c0_132, %c0_133] : memref<16x8x16xbf16, #tpu.memory_space<vmem>>, vector<1x8x16xbf16>
    %228 = vector.shape_cast %227 : vector<1x8x16xbf16> to vector<8x16xbf16>
    %cst_134 = arith.constant dense<0.000000e+00> : vector<8x128xf32>
    %229 = tpu.matmul %228, %226, %cst_134 {dimension_numbers = #tpu.dot_dimension_numbers<[1], [0], [0], [1], [0, 0, 1, 1], [], []>} : vector<8x16xbf16>, vector<16x128xbf16>, vector<8x128xf32> -> vector<8x128xf32>
    %230 = arith.addf %224, %229 : vector<8x128xf32>
    %231 = vector.broadcast %0 : vector<1x128xf32> to vector<8x128xf32>
    %232 = arith.mulf %230, %231 : vector<8x128xf32>
    %cst_135 = arith.constant dense<0.000000e+00> : vector<8xf32>
    %233 = vector.multi_reduction <add>, %232, %cst_135 [1] : vector<8x128xf32> to vector<8xf32>
    %234 = vector.shape_cast %233 : vector<8xf32> to vector<8x1xf32>
    %cst_136 = arith.constant 0.0204081628 : f32
    %235 = vector.broadcast %cst_136 : f32 to vector<8x1xf32>
    %236 = arith.mulf %234, %235 : vector<8x1xf32>
    %237 = vector.broadcast %236 : vector<8x1xf32> to vector<8x128xf32>
    %238 = arith.subf %230, %237 : vector<8x128xf32>
    %239 = vector.broadcast %0 : vector<1x128xf32> to vector<8x128xf32>
    %240 = arith.mulf %238, %239 : vector<8x128xf32>
    %241 = arith.mulf %240, %240 : vector<8x128xf32>
    %cst_137 = arith.constant dense<0.000000e+00> : vector<8xf32>
    %242 = vector.multi_reduction <add>, %241, %cst_137 [1] : vector<8x128xf32> to vector<8xf32>
    %243 = vector.shape_cast %242 : vector<8xf32> to vector<8x1xf32>
    %cst_138 = arith.constant 0.0204081628 : f32
    %244 = vector.broadcast %cst_138 : f32 to vector<8x1xf32>
    %245 = arith.mulf %243, %244 : vector<8x1xf32>
    %cst_139 = arith.constant 9.99999974E-6 : f32
    %246 = vector.broadcast %cst_139 : f32 to vector<8x1xf32>
    %247 = arith.addf %245, %246 : vector<8x1xf32>
    %248 = math.rsqrt %247 : vector<8x1xf32>
    %249 = arith.mulf %1, %248 : vector<8x1xf32>
    %250 = arith.mulf %236, %249 : vector<8x1xf32>
    %251 = arith.subf %2, %250 : vector<8x1xf32>
    %252 = vector.broadcast %249 : vector<8x1xf32> to vector<8x128xf32>
    %253 = arith.mulf %230, %252 : vector<8x128xf32>
    %254 = vector.broadcast %251 : vector<8x1xf32> to vector<8x128xf32>
    %255 = arith.addf %253, %254 : vector<8x128xf32>
    %cst_140 = arith.constant 0.000000e+00 : f32
    %256 = vector.broadcast %cst_140 : f32 to vector<8x128xf32>
    %257 = arith.cmpf ogt, %255, %256 : vector<8x128xf32>
    %cst_141 = arith.constant 2.000000e-01 : f32
    %258 = vector.broadcast %cst_141 : f32 to vector<8x128xf32>
    %259 = arith.mulf %258, %255 : vector<8x128xf32>
    %260 = arith.select %257, %255, %259 : vector<8x128xi1>, vector<8x128xf32>
    %261 = arith.truncf %260 : vector<8x128xf32> to vector<8x128xbf16>
    %c1_142 = arith.constant 1 : index
    %c0_143 = arith.constant 0 : index
    %c0_144 = arith.constant 0 : index
    %262 = vector.load %arg5[%c1_142, %c0_143, %c0_144] : memref<2x8x128xbf16, #tpu.memory_space<vmem>>, vector<1x8x128xbf16>
    %263 = vector.shape_cast %262 : vector<1x8x128xbf16> to vector<8x128xbf16>
    %264 = vector.shape_cast %261 : vector<8x128xbf16> to vector<1x8x128xbf16>
    tpu.vector_store %arg5[%c1_142, %c0_143, %c0_144], %264 {strides = array<i32>} : memref<2x8x128xbf16, #tpu.memory_space<vmem>>, vector<1x8x128xbf16>,
    return
  }
  func.func @transform_0(%arg0: i32) -> (i32, i32, i32) {
    %c0_i32 = arith.constant 0 : i32
    %c0_i32_0 = arith.constant 0 : i32
    %c0_i32_1 = arith.constant 0 : i32
    %c0_i32_2 = arith.constant 0 : i32
    return %c0_i32, %c0_i32_0, %c0_i32_1 : i32, i32, i32
  }
  func.func @transform_1(%arg0: i32) -> (i32, i32, i32, i32) {
    %c0_i32 = arith.constant 0 : i32
    %c0_i32_0 = arith.constant 0 : i32
    %c0_i32_1 = arith.constant 0 : i32
    %c0_i32_2 = arith.constant 0 : i32
    return %arg0, %c0_i32, %c0_i32_0, %c0_i32_1 : i32, i32, i32, i32
  }
  func.func @transform_2(%arg0: i32) -> (i32, i32) {
    %c0_i32 = arith.constant 0 : i32
    %c0_i32_0 = arith.constant 0 : i32
    %c0_i32_1 = arith.constant 0 : i32
    return %c0_i32, %c0_i32_0 : i32, i32
  }
  func.func @transform_3(%arg0: i32) -> (i32, i32) {
    %c0_i32 = arith.constant 0 : i32
    %c0_i32_0 = arith.constant 0 : i32
    %c0_i32_1 = arith.constant 0 : i32
    return %c0_i32, %c0_i32_0 : i32, i32
  }
  func.func @transform_4(%arg0: i32) -> (i32, i32, i32) {
    %c0_i32 = arith.constant 0 : i32
    %c0_i32_0 = arith.constant 0 : i32
    %c0_i32_1 = arith.constant 0 : i32
    return %arg0, %c0_i32, %c0_i32_0 : i32, i32, i32
  }
}

</mosaic_0001>

<llo_original>
// kernel: tpu_custom_call.1
$region0: #{tpu_custom_call.1}
  #allocation0 [shape = 'u32[]', space=smem, size = 0x4, offset = 0x4, fixed_abs, tag = 'smem constant byte address 0x4 - core index']
  #allocation1 [shape = 'u32[144,128]{1,0:T(1,128)}', space=vmem, size = 0x12000, scoped, tag = 'internal scratch']
  %s0 = inlined_call_operand.hbm [shape: bf16[16,8,16], index: 0, kind: input, shape index: {}]
  %s1 = inlined_call_operand.hbm [shape: bf16[2,4,16,256], index: 1, kind: input, shape index: {}]
  %s2 = inlined_call_operand.vmem [shape: f32[8,2], index: 2, kind: input, shape index: {}]
  %s3 = inlined_call_operand.vmem [shape: f32[1,128], index: 3, kind: input, shape index: {}]
  %s4 = inlined_call_operand.hbm [shape: bf16[2,8,128], index: 4, kind: output, shape index: {}]
  %s5 = sld [smem:[#allocation0]]
  $region34: #{tpu_custom_call.1} parent=0
    _
  %s7 = ssub.s32 1, %s5
  %s8 = scalar_select 0, %s7, %s5
  $region1: #{tpu_custom_call.1} parent=0
    #allocation2 [shape = 'u8[32768]{0}', space=vmem, size = 0x8000, scoped, tag = 'input window, operand 0, single buffered']
    #allocation3 [shape = 's32[1]{0}', space=sflag, size = 0x4, scoped, tag = 'scoped memory for tpu_custom_call.1']
    #allocation4 [shape = 's32[1]{0}', space=sflag, size = 0x4, scoped, tag = 'scoped memory for tpu_custom_call.1']
    #allocation5 [shape = 'u8[65536]{0}', space=vmem, size = 0x10000, scoped, tag = 'input window, operand 1, single buffered']
    #allocation6 [shape = 's32[1]{0}', space=sflag, size = 0x4, scoped, tag = 'scoped memory for tpu_custom_call.1']
    #allocation7 [shape = 'u8[4096]{0}', space=vmem, size = 0x1000, scoped, tag = 'output window, operand 0, single buffered']
    %9 = vsyncpa [#allocation3], 0
    %10 = vsyncpa [#allocation6], 0
    %11 = vsyncpa [#allocation4], 0
    // Predicated region
    $region2: #{tpu_custom_call.1} parent=1 // pred_check
      _
    $region3: #{tpu_custom_call.1} parent=1 // pred_check_branch
      %13 = sbr.rel (0) target = $region5
    $region4: #{tpu_custom_call.1} parent=1 // pred_region
      %s15 = ssub.s32 1024, 1024
      %16 = vsyncadd [#allocation3], %s15
      %s17 = sshll.u32 [#allocation2], 4
      %s18 = int_to_ptr.vmem [resolvable:$true] %s17
      %23 = dma.hbm_to_vmem [thread:$0]  %s0, 1024, %s18, [#allocation3], 64, 64, 4
    $region5: #{tpu_custom_call.1} parent=1 // pred_fallthru
      _
    // Predicated region
    $region6: #{tpu_custom_call.1} parent=1 // pred_check
      _
    $region7: #{tpu_custom_call.1} parent=1 // pred_check_branch
      %25 = sbr.rel (0) target = $region9
    $region8: #{tpu_custom_call.1} parent=1 // pred_region
      %s27 = ssub.s32 2048, 2048
      %28 = vsyncadd [#allocation6], %s27
      %s29 = sshll.u32 [#allocation5], 4
      %s30 = int_to_ptr.vmem [resolvable:$true] %s29
      %35 = dma.hbm_to_vmem [thread:$0]  %s1, 2048, %s30, [#allocation6], 128, 128, 8
    $region9: #{tpu_custom_call.1} parent=1 // pred_fallthru
      _
    // Predicated region
    $region10: #{tpu_custom_call.1} parent=1 // pred_check
      _
    $region11: #{tpu_custom_call.1} parent=1 // pred_check_branch
      %37 = sbr.rel (0) target = $region13
    $region12: #{tpu_custom_call.1} parent=1 // pred_region
      _
    $region13: #{tpu_custom_call.1} parent=1 // pred_fallthru
      _
    // Predicated region
    $region14: #{tpu_custom_call.1} parent=1 // pred_check
      _
    $region15: #{tpu_custom_call.1} parent=1 // pred_check_branch
      %39 = sbr.rel (0) target = $region17
    $region16: #{tpu_custom_call.1} parent=1 // pred_region
      _
    $region17: #{tpu_custom_call.1} parent=1 // pred_fallthru
      _
    // Predicated region
    $region18: #{tpu_custom_call.1} parent=1 // pred_check
      _
    $region19: #{tpu_custom_call.1} parent=1 // pred_check_branch
      %41 = sbr.rel (0) target = $region21
    $region20: #{tpu_custom_call.1} parent=1 // pred_region
      %42 = dma.done [#allocation3], 1024
    $region21: #{tpu_custom_call.1} parent=1 // pred_fallthru
      _
    // Predicated region
    $region22: #{tpu_custom_call.1} parent=1 // pred_check
      _
    $region23: #{tpu_custom_call.1} parent=1 // pred_check_branch
      %44 = sbr.rel (0) target = $region25
    $region24: #{tpu_custom_call.1} parent=1 // pred_region
      %45 = dma.done [#allocation6], 2048
    $region25: #{tpu_custom_call.1} parent=1 // pred_fallthru
      _
    %v47 = vld [vmem:[%s3] sm:$0x1]
    %v48 = vld [vmem:[%s2] sm:$0xff]
    %v49 = vld [vmem:[#allocation5] sm:$0xff]
    %v50 = vld [vmem:[#allocation5 + $0x8] sm:$0xff]
    %v51 = vld [vmem:[#allocation5 + $0x10] sm:$0xff]
    %v52 = vld [vmem:[#allocation5 + $0x18] sm:$0xff]
    %v53 = vld [vmem:[#allocation5 + $0x20] sm:$0xff]
    %v54 = vld [vmem:[#allocation5 + $0x28] sm:$0xff]
    %v55 = vld [vmem:[#allocation5 + $0x30] sm:$0xff]
    %v56 = vld [vmem:[#allocation5 + $0x38] sm:$0xff]
    %v57 = vld [vmem:[#allocation2] sm:$0xf]
    %s58 = scalar_lea.vmem [#allocation2], 4
    %v59 = vld [vmem:[%s58] sm:$0xf]
    %v62 = vunpack.c.l.b16 %v51
    %v63 = vunpack.c.l.b16 %v52
    %v64 = vpack.c.b16 %v63, %v62
    %vm66 = vcmask 130048
    %v68 = vsel %vm66, %v59, 0
    %70 = vmatprep.subr.bf16.mxu0 0
    %71 = vmatpush1.bf16.msra.mxu0 %v64
    %72 = vmatprep.subr.bf16.mxu0 0
    %73 = vmatpush1.bf16.msra.mxu0 0
    %74 = vmatprep.subr.bf16.mxu0 0
    %75 = vmatpush1.bf16.msra.mxu0 0
    %76 = vmatprep.subr.bf16.mxu0 0
    %77 = vmatpush1.bf16.msra.mxu0 0
    %78 = vmatprep.subr.bf16.mxu0 0
    %79 = vmatpush1.bf16.msra.mxu0 0
    %80 = vmatprep.subr.bf16.mxu0 0
    %81 = vmatpush1.bf16.msra.mxu0 0
    %82 = vmatprep.subr.bf16.mxu0 0
    %83 = vmatpush1.bf16.msra.mxu0 0
    %84 = vmatprep.subr.bf16.mxu0 0
    %85 = vmatpush1.bf16.msra.mxu0 0
    %86 = vmatprep.subr.bf16.mxu0 0
    %87 = vmatpush1.bf16.msra.mxu0 0
    %88 = vmatprep.subr.bf16.mxu0 0
    %89 = vmatpush1.bf16.msra.mxu0 0
    %90 = vmatprep.subr.bf16.mxu0 0
    %91 = vmatpush1.bf16.msra.mxu0 0
    %92 = vmatprep.subr.bf16.mxu0 0
    %93 = vmatpush1.bf16.msra.mxu0 0
    %94 = vmatprep.subr.bf16.mxu0 0
    %95 = vmatpush1.bf16.msra.mxu0 0
    %96 = vmatprep.subr.bf16.mxu0 0
    %97 = vmatpush1.bf16.msra.mxu0 0
    %98 = vmatprep.subr.bf16.mxu0 0
    %99 = vmatpush1.bf16.msra.mxu0 0
    %100 = vmatprep.subr.bf16.mxu0 0
    %101 = vmatpush1.bf16.msra.mxu0 0
    %102 = vmatprep.mubr.bf16.mxu0 0
    %103 = vmatmul.mubr.bf16.gmra.mrb[0].mxu0 %v68
    %v104 = vpop.f32.mrb[0].mxu0
    %v105 = vadd.f32 0.0, %v104
    %v106 = vpop.f32.mrb[0].mxu0
    %v107 = vpop.f32.mrb[0].mxu0
    %v108 = vpop.f32.mrb[0].mxu0
    %109 = vdwg.mxu0
    %v112 = vunpack.c.l.b16 %v49
    %v113 = vunpack.c.l.b16 %v50
    %v114 = vpack.c.b16 %v113, %v112
    %v117 = vsel %vm66, %v57, 0
    %119 = vmatprep.subr.bf16.mxu0 0
    %120 = vmatpush1.bf16.msra.mxu0 %v114
    %121 = vmatprep.subr.bf16.mxu0 0
    %122 = vmatpush1.bf16.msra.mxu0 0
    %123 = vmatprep.subr.bf16.mxu0 0
    %124 = vmatpush1.bf16.msra.mxu0 0
    %125 = vmatprep.subr.bf16.mxu0 0
    %126 = vmatpush1.bf16.msra.mxu0 0
    %127 = vmatprep.subr.bf16.mxu0 0
    %128 = vmatpush1.bf16.msra.mxu0 0
    %129 = vmatprep.subr.bf16.mxu0 0
    %130 = vmatpush1.bf16.msra.mxu0 0
    %131 = vmatprep.subr.bf16.mxu0 0
    %132 = vmatpush1.bf16.msra.mxu0 0
    %133 = vmatprep.subr.bf16.mxu0 0
    %134 = vmatpush1.bf16.msra.mxu0 0
    %135 = vmatprep.subr.bf16.mxu0 0
    %136 = vmatpush1.bf16.msra.mxu0 0
    %137 = vmatprep.subr.bf16.mxu0 0
    %138 = vmatpush1.bf16.msra.mxu0 0
    %139 = vmatprep.subr.bf16.mxu0 0
    %140 = vmatpush1.bf16.msra.mxu0 0
    %141 = vmatprep.subr.bf16.mxu0 0
    %142 = vmatpush1.bf16.msra.mxu0 0
    %143 = vmatprep.subr.bf16.mxu0 0
    %144 = vmatpush1.bf16.msra.mxu0 0
    %145 = vmatprep.subr.bf16.mxu0 0
    %146 = vmatpush1.bf16.msra.mxu0 0
    %147 = vmatprep.subr.bf16.mxu0 0
    %148 = vmatpush1.bf16.msra.mxu0 0
    %149 = vmatprep.subr.bf16.mxu0 0
    %150 = vmatpush1.bf16.msra.mxu0 0
    %151 = vmatprep.mubr.bf16.mxu0 0
    %152 = vmatmul.mubr.bf16.gmra.mrb[0].mxu0 %v117
    %v153 = vpop.f32.mrb[0].mxu0
    %v154 = vadd.f32 %v105, %v153
    %v155 = vpop.f32.mrb[0].mxu0
    %v156 = vpop.f32.mrb[0].mxu0
    %v157 = vpop.f32.mrb[0].mxu0
    %158 = vdwg.mxu0
    %s159 = scalar_lea.vmem [#allocation2], 8
    %v160 = vld [vmem:[%s159] sm:$0xf]
    %v161 = vunpack.c.h.b16 %v49
    %v162 = vunpack.c.h.b16 %v50
    %v163 = vpack.c.b16 %v162, %v161
    %164 = vrot.lane.b32.xlu0 %v114, 127
    %v165 = vpop.permute.xlu0 %164
    %166 = vrot.lane.b32.xlu0 %v163, 127
    %v167 = vpop.permute.xlu0 %166
    %vm168 = vcmask 1039360
    %v169 = vsel %vm168, %v165, %v167
    %v172 = vsel %vm66, %v160, 0
    %174 = vmatprep.subr.bf16.mxu0 0
    %175 = vmatpush1.bf16.msra.mxu0 %v169
    %176 = vmatprep.subr.bf16.mxu0 0
    %177 = vmatpush1.bf16.msra.mxu0 0
    %178 = vmatprep.subr.bf16.mxu0 0
    %179 = vmatpush1.bf16.msra.mxu0 0
    %180 = vmatprep.subr.bf16.mxu0 0
    %181 = vmatpush1.bf16.msra.mxu0 0
    %182 = vmatprep.subr.bf16.mxu0 0
    %183 = vmatpush1.bf16.msra.mxu0 0
    %184 = vmatprep.subr.bf16.mxu0 0
    %185 = vmatpush1.bf16.msra.mxu0 0
    %186 = vmatprep.subr.bf16.mxu0 0
    %187 = vmatpush1.bf16.msra.mxu0 0
    %188 = vmatprep.subr.bf16.mxu0 0
    %189 = vmatpush1.bf16.msra.mxu0 0
    %190 = vmatprep.subr.bf16.mxu0 0
    %191 = vmatpush1.bf16.msra.mxu0 0
    %192 = vmatprep.subr.bf16.mxu0 0
    %193 = vmatpush1.bf16.msra.mxu0 0
    %194 = vmatprep.subr.bf16.mxu0 0
    %195 = vmatpush1.bf16.msra.mxu0 0
    %196 = vmatprep.subr.bf16.mxu0 0
    %197 = vmatpush1.bf16.msra.mxu0 0
    %198 = vmatprep.subr.bf16.mxu0 0
    %199 = vmatpush1.bf16.msra.mxu0 0
    %200 = vmatprep.subr.bf16.mxu0 0
    %201 = vmatpush1.bf16.msra.mxu0 0
    %202 = vmatprep.subr.bf16.mxu0 0
    %203 = vmatpush1.bf16.msra.mxu0 0
    %204 = vmatprep.subr.bf16.mxu0 0
    %205 = vmatpush1.bf16.msra.mxu0 0
    %206 = vmatprep.mubr.bf16.mxu0 0
    %207 = vmatmul.mubr.bf16.gmra.mrb[0].mxu0 %v172
    %v208 = vpop.f32.mrb[0].mxu0
    %v209 = vadd.f32 0.0, %v208
    %v210 = vpop.f32.mrb[0].mxu0
    %v211 = vpop.f32.mrb[0].mxu0
    %v212 = vpop.f32.mrb[0].mxu0
    %213 = vdwg.mxu0
    %v214 = vadd.f32 %v154, %v209
    %s215 = scalar_lea.vmem [#allocation2], 12
    %v216 = vld [vmem:[%s215] sm:$0xf]
    %v217 = vunpack.c.h.b16 %v51
    %v218 = vunpack.c.h.b16 %v52
    %v219 = vpack.c.b16 %v218, %v217
    %220 = vrot.lane.b32.xlu0 %v64, 127
    %v221 = vpop.permute.xlu0 %220
    %222 = vrot.lane.b32.xlu0 %v219, 127
    %v223 = vpop.permute.xlu0 %222
    %v224 = vsel %vm168, %v221, %v223
    %v227 = vsel %vm66, %v216, 0
    %229 = vmatprep.subr.bf16.mxu0 0
    %230 = vmatpush1.bf16.msra.mxu0 %v224
    %231 = vmatprep.subr.bf16.mxu0 0
    %232 = vmatpush1.bf16.msra.mxu0 0
    %233 = vmatprep.subr.bf16.mxu0 0
    %234 = vmatpush1.bf16.msra.mxu0 0
    %235 = vmatprep.subr.bf16.mxu0 0
    %236 = vmatpush1.bf16.msra.mxu0 0
    %237 = vmatprep.subr.bf16.mxu0 0
    %238 = vmatpush1.bf16.msra.mxu0 0
    %239 = vmatprep.subr.bf16.mxu0 0
    %240 = vmatpush1.bf16.msra.mxu0 0
    %241 = vmatprep.subr.bf16.mxu0 0
    %242 = vmatpush1.bf16.msra.mxu0 0
    %243 = vmatprep.subr.bf16.mxu0 0
    %244 = vmatpush1.bf16.msra.mxu0 0
    %245 = vmatprep.subr.bf16.mxu0 0
    %246 = vmatpush1.bf16.msra.mxu0 0
    %247 = vmatprep.subr.bf16.mxu0 0
    %248 = vmatpush1.bf16.msra.mxu0 0
    %249 = vmatprep.subr.bf16.mxu0 0
    %250 = vmatpush1.bf16.msra.mxu0 0
    %251 = vmatprep.subr.bf16.mxu0 0
    %252 = vmatpush1.bf16.msra.mxu0 0
    %253 = vmatprep.subr.bf16.mxu0 0
    %254 = vmatpush1.bf16.msra.mxu0 0
    %255 = vmatprep.subr.bf16.mxu0 0
    %256 = vmatpush1.bf16.msra.mxu0 0
    %257 = vmatprep.subr.bf16.mxu0 0
    %258 = vmatpush1.bf16.msra.mxu0 0
    %259 = vmatprep.subr.bf16.mxu0 0
    %260 = vmatpush1.bf16.msra.mxu0 0
    %261 = vmatprep.mubr.bf16.mxu0 0
    %262 = vmatmul.mubr.bf16.gmra.mrb[0].mxu0 %v227
    %v263 = vpop.f32.mrb[0].mxu0
    %v264 = vadd.f32 0.0, %v263
    %v265 = vpop.f32.mrb[0].mxu0
    %v266 = vpop.f32.mrb[0].mxu0
    %v267 = vpop.f32.mrb[0].mxu0
    %268 = vdwg.mxu0
    %v269 = vadd.f32 %v214, %v264
    %s270 = scalar_lea.vmem [#allocation2], 16
    %v271 = vld [vmem:[%s270] sm:$0xf]
    %v274 = vunpack.c.l.b16 %v53
    %v275 = vunpack.c.l.b16 %v54
    %v276 = vpack.c.b16 %v275, %v274
    %v279 = vsel %vm66, %v271, 0
    %281 = vmatprep.subr.bf16.mxu0 0
    %282 = vmatpush1.bf16.msra.mxu0 %v276
    %283 = vmatprep.subr.bf16.mxu0 0
    %284 = vmatpush1.bf16.msra.mxu0 0
    %285 = vmatprep.subr.bf16.mxu0 0
    %286 = vmatpush1.bf16.msra.mxu0 0
    %287 = vmatprep.subr.bf16.mxu0 0
    %288 = vmatpush1.bf16.msra.mxu0 0
    %289 = vmatprep.subr.bf16.mxu0 0
    %290 = vmatpush1.bf16.msra.mxu0 0
    %291 = vmatprep.subr.bf16.mxu0 0
    %292 = vmatpush1.bf16.msra.mxu0 0
    %293 = vmatprep.subr.bf16.mxu0 0
    %294 = vmatpush1.bf16.msra.mxu0 0
    %295 = vmatprep.subr.bf16.mxu0 0
    %296 = vmatpush1.bf16.msra.mxu0 0
    %297 = vmatprep.subr.bf16.mxu0 0
    %298 = vmatpush1.bf16.msra.mxu0 0
    %299 = vmatprep.subr.bf16.mxu0 0
    %300 = vmatpush1.bf16.msra.mxu0 0
    %301 = vmatprep.subr.bf16.mxu0 0
    %302 = vmatpush1.bf16.msra.mxu0 0
    %303 = vmatprep.subr.bf16.mxu0 0
    %304 = vmatpush1.bf16.msra.mxu0 0
    %305 = vmatprep.subr.bf16.mxu0 0
    %306 = vmatpush1.bf16.msra.mxu0 0
    %307 = vmatprep.subr.bf16.mxu0 0
    %308 = vmatpush1.bf16.msra.mxu0 0
    %309 = vmatprep.subr.bf16.mxu0 0
    %310 = vmatpush1.bf16.msra.mxu0 0
    %311 = vmatprep.subr.bf16.mxu0 0
    %312 = vmatpush1.bf16.msra.mxu0 0
    %313 = vmatprep.mubr.bf16.mxu0 0
    %314 = vmatmul.mubr.bf16.gmra.mrb[0].mxu0 %v279
    %v315 = vpop.f32.mrb[0].mxu0
    %v316 = vadd.f32 0.0, %v315
    %v317 = vpop.f32.mrb[0].mxu0
    %v318 = vpop.f32.mrb[0].mxu0
    %v319 = vpop.f32.mrb[0].mxu0
    %320 = vdwg.mxu0
    %v321 = vadd.f32 %v269, %v316
    %s322 = scalar_lea.vmem [#allocation2], 20
    %v323 = vld [vmem:[%s322] sm:$0xf]
    %v326 = vunpack.c.l.b16 %v55
    %v327 = vunpack.c.l.b16 %v56
    %v328 = vpack.c.b16 %v327, %v326
    %v331 = vsel %vm66, %v323, 0
    %333 = vmatprep.subr.bf16.mxu0 0
    %334 = vmatpush1.bf16.msra.mxu0 %v328
    %335 = vmatprep.subr.bf16.mxu0 0
    %336 = vmatpush1.bf16.msra.mxu0 0
    %337 = vmatprep.subr.bf16.mxu0 0
    %338 = vmatpush1.bf16.msra.mxu0 0
    %339 = vmatprep.subr.bf16.mxu0 0
    %340 = vmatpush1.bf16.msra.mxu0 0
    %341 = vmatprep.subr.bf16.mxu0 0
    %342 = vmatpush1.bf16.msra.mxu0 0
    %343 = vmatprep.subr.bf16.mxu0 0
    %344 = vmatpush1.bf16.msra.mxu0 0
    %345 = vmatprep.subr.bf16.mxu0 0
    %346 = vmatpush1.bf16.msra.mxu0 0
    %347 = vmatprep.subr.bf16.mxu0 0
    %348 = vmatpush1.bf16.msra.mxu0 0
    %349 = vmatprep.subr.bf16.mxu0 0
    %350 = vmatpush1.bf16.msra.mxu0 0
    %351 = vmatprep.subr.bf16.mxu0 0
    %352 = vmatpush1.bf16.msra.mxu0 0
    %353 = vmatprep.subr.bf16.mxu0 0
    %354 = vmatpush1.bf16.msra.mxu0 0
    %355 = vmatprep.subr.bf16.mxu0 0
    %356 = vmatpush1.bf16.msra.mxu0 0
    %357 = vmatprep.subr.bf16.mxu0 0
    %358 = vmatpush1.bf16.msra.mxu0 0
    %359 = vmatprep.subr.bf16.mxu0 0
    %360 = vmatpush1.bf16.msra.mxu0 0
    %361 = vmatprep.subr.bf16.mxu0 0
    %362 = vmatpush1.bf16.msra.mxu0 0
    %363 = vmatprep.subr.bf16.mxu0 0
    %364 = vmatpush1.bf16.msra.mxu0 0
    %365 = vmatprep.mubr.bf16.mxu0 0
    %366 = vmatmul.mubr.bf16.gmra.mrb[0].mxu0 %v331
    %v367 = vpop.f32.mrb[0].mxu0
    %v368 = vadd.f32 0.0, %v367
    %v369 = vpop.f32.mrb[0].mxu0
    %v370 = vpop.f32.mrb[0].mxu0
    %v371 = vpop.f32.mrb[0].mxu0
    %372 = vdwg.mxu0
    %v373 = vadd.f32 %v321, %v368
    %s374 = scalar_lea.vmem [#allocation2], 24
    %v375 = vld [vmem:[%s374] sm:$0xf]
    %v376 = vunpack.c.h.b16 %v53
    %v377 = vunpack.c.h.b16 %v54
    %v378 = vpack.c.b16 %v377, %v376
    %379 = vrot.lane.b32.xlu0 %v276, 127
    %v380 = vpop.permute.xlu0 %379
    %381 = vrot.lane.b32.xlu0 %v378, 127
    %v382 = vpop.permute.xlu0 %381
    %v383 = vsel %vm168, %v380, %v382
    %v386 = vsel %vm66, %v375, 0
    %388 = vmatprep.subr.bf16.mxu0 0
    %389 = vmatpush1.bf16.msra.mxu0 %v383
    %390 = vmatprep.subr.bf16.mxu0 0
    %391 = vmatpush1.bf16.msra.mxu0 0
    %392 = vmatprep.subr.bf16.mxu0 0
    %393 = vmatpush1.bf16.msra.mxu0 0
    %394 = vmatprep.subr.bf16.mxu0 0
    %395 = vmatpush1.bf16.msra.mxu0 0
    %396 = vmatprep.subr.bf16.mxu0 0
    %397 = vmatpush1.bf16.msra.mxu0 0
    %398 = vmatprep.subr.bf16.mxu0 0
    %399 = vmatpush1.bf16.msra.mxu0 0
    %400 = vmatprep.subr.bf16.mxu0 0
    %401 = vmatpush1.bf16.msra.mxu0 0
    %402 = vmatprep.subr.bf16.mxu0 0
    %403 = vmatpush1.bf16.msra.mxu0 0
    %404 = vmatprep.subr.bf16.mxu0 0
    %405 = vmatpush1.bf16.msra.mxu0 0
    %406 = vmatprep.subr.bf16.mxu0 0
    %407 = vmatpush1.bf16.msra.mxu0 0
    %408 = vmatprep.subr.bf16.mxu0 0
    %409 = vmatpush1.bf16.msra.mxu0 0
    %410 = vmatprep.subr.bf16.mxu0 0
    %411 = vmatpush1.bf16.msra.mxu0 0
    %412 = vmatprep.subr.bf16.mxu0 0
    %413 = vmatpush1.bf16.msra.mxu0 0
    %414 = vmatprep.subr.bf16.mxu0 0
    %415 = vmatpush1.bf16.msra.mxu0 0
    %416 = vmatprep.subr.bf16.mxu0 0
    %417 = vmatpush1.bf16.msra.mxu0 0
    %418 = vmatprep.subr.bf16.mxu0 0
    %419 = vmatpush1.bf16.msra.mxu0 0
    %420 = vmatprep.mubr.bf16.mxu0 0
    %421 = vmatmul.mubr.bf16.gmra.mrb[0].mxu0 %v386
    %v422 = vpop.f32.mrb[0].mxu0
    %v423 = vadd.f32 0.0, %v422
    %v424 = vpop.f32.mrb[0].mxu0
    %v425 = vpop.f32.mrb[0].mxu0
    %v426 = vpop.f32.mrb[0].mxu0
    %427 = vdwg.mxu0
    %v428 = vadd.f32 %v373, %v423
    %s429 = scalar_lea.vmem [#allocation2], 28
    %v430 = vld [vmem:[%s429] sm:$0xf]
    %v431 = vunpack.c.h.b16 %v55
    %v432 = vunpack.c.h.b16 %v56
    %v433 = vpack.c.b16 %v432, %v431
    %434 = vrot.lane.b32.xlu0 %v328, 127
    %v435 = vpop.permute.xlu0 %434
    %436 = vrot.lane.b32.xlu0 %v433, 127
    %v437 = vpop.permute.xlu0 %436
    %v438 = vsel %vm168, %v435, %v437
    %v441 = vsel %vm66, %v430, 0
    %443 = vmatprep.subr.bf16.mxu0 0
    %444 = vmatpush1.bf16.msra.mxu0 %v438
    %445 = vmatprep.subr.bf16.mxu0 0
    %446 = vmatpush1.bf16.msra.mxu0 0
    %447 = vmatprep.subr.bf16.mxu0 0
    %448 = vmatpush1.bf16.msra.mxu0 0
    %449 = vmatprep.subr.bf16.mxu0 0
    %450 = vmatpush1.bf16.msra.mxu0 0
    %451 = vmatprep.subr.bf16.mxu0 0
    %452 = vmatpush1.bf16.msra.mxu0 0
    %453 = vmatprep.subr.bf16.mxu0 0
    %454 = vmatpush1.bf16.msra.mxu0 0
    %455 = vmatprep.subr.bf16.mxu0 0
    %456 = vmatpush1.bf16.msra.mxu0 0
    %457 = vmatprep.subr.bf16.mxu0 0
    %458 = vmatpush1.bf16.msra.mxu0 0
    %459 = vmatprep.subr.bf16.mxu0 0
    %460 = vmatpush1.bf16.msra.mxu0 0
    %461 = vmatprep.subr.bf16.mxu0 0
    %462 = vmatpush1.bf16.msra.mxu0 0
    %463 = vmatprep.subr.bf16.mxu0 0
    %464 = vmatpush1.bf16.msra.mxu0 0
    %465 = vmatprep.subr.bf16.mxu0 0
    %466 = vmatpush1.bf16.msra.mxu0 0
    %467 = vmatprep.subr.bf16.mxu0 0
    %468 = vmatpush1.bf16.msra.mxu0 0
    %469 = vmatprep.subr.bf16.mxu0 0
    %470 = vmatpush1.bf16.msra.mxu0 0
    %471 = vmatprep.subr.bf16.mxu0 0
    %472 = vmatpush1.bf16.msra.mxu0 0
    %473 = vmatprep.subr.bf16.mxu0 0
    %474 = vmatpush1.bf16.msra.mxu0 0
    %475 = vmatprep.mubr.bf16.mxu0 0
    %476 = vmatmul.mubr.bf16.gmra.mrb[0].mxu0 %v441
    %v477 = vpop.f32.mrb[0].mxu0
    %v478 = vadd.f32 0.0, %v477
    %v479 = vpop.f32.mrb[0].mxu0
    %v480 = vpop.f32.mrb[0].mxu0
    %v481 = vpop.f32.mrb[0].mxu0
    %482 = vdwg.mxu0
    %v483 = vadd.f32 %v428, %v478
    %s484 = scalar_lea.vmem [#allocation2], 32
    %v485 = vld [vmem:[%s484] sm:$0xf]
    %486 = vrot.lane.b32.xlu0 %v114, 120
    %v487 = vpop.permute.xlu0 %486
    %488 = vrot.lane.b32.xlu0 %v163, 120
    %v489 = vpop.permute.xlu0 %488
    %vm490 = vcmask 982016
    %v491 = vsel %vm490, %v487, %v489
    %v494 = vsel %vm66, %v485, 0
    %496 = vmatprep.subr.bf16.mxu0 0
    %497 = vmatpush1.bf16.msra.mxu0 %v491
    %498 = vmatprep.subr.bf16.mxu0 0
    %499 = vmatpush1.bf16.msra.mxu0 0
    %500 = vmatprep.subr.bf16.mxu0 0
    %501 = vmatpush1.bf16.msra.mxu0 0
    %502 = vmatprep.subr.bf16.mxu0 0
    %503 = vmatpush1.bf16.msra.mxu0 0
    %504 = vmatprep.subr.bf16.mxu0 0
    %505 = vmatpush1.bf16.msra.mxu0 0
    %506 = vmatprep.subr.bf16.mxu0 0
    %507 = vmatpush1.bf16.msra.mxu0 0
    %508 = vmatprep.subr.bf16.mxu0 0
    %509 = vmatpush1.bf16.msra.mxu0 0
    %510 = vmatprep.subr.bf16.mxu0 0
    %511 = vmatpush1.bf16.msra.mxu0 0
    %512 = vmatprep.subr.bf16.mxu0 0
    %513 = vmatpush1.bf16.msra.mxu0 0
    %514 = vmatprep.subr.bf16.mxu0 0
    %515 = vmatpush1.bf16.msra.mxu0 0
    %516 = vmatprep.subr.bf16.mxu0 0
    %517 = vmatpush1.bf16.msra.mxu0 0
    %518 = vmatprep.subr.bf16.mxu0 0
    %519 = vmatpush1.bf16.msra.mxu0 0
    %520 = vmatprep.subr.bf16.mxu0 0
    %521 = vmatpush1.bf16.msra.mxu0 0
    %522 = vmatprep.subr.bf16.mxu0 0
    %523 = vmatpush1.bf16.msra.mxu0 0
    %524 = vmatprep.subr.bf16.mxu0 0
    %525 = vmatpush1.bf16.msra.mxu0 0
    %526 = vmatprep.subr.bf16.mxu0 0
    %527 = vmatpush1.bf16.msra.mxu0 0
    %528 = vmatprep.mubr.bf16.mxu0 0
    %529 = vmatmul.mubr.bf16.gmra.mrb[0].mxu0 %v494
    %v530 = vpop.f32.mrb[0].mxu0
    %v531 = vadd.f32 0.0, %v530
    %v532 = vpop.f32.mrb[0].mxu0
    %v533 = vpop.f32.mrb[0].mxu0
    %v534 = vpop.f32.mrb[0].mxu0
    %535 = vdwg.mxu0
    %v536 = vadd.f32 %v483, %v531
    %s537 = scalar_lea.vmem [#allocation2], 36
    %v538 = vld [vmem:[%s537] sm:$0xf]
    %539 = vrot.lane.b32.xlu0 %v64, 120
    %v540 = vpop.permute.xlu0 %539
    %541 = vrot.lane.b32.xlu0 %v219, 120
    %v542 = vpop.permute.xlu0 %541
    %v543 = vsel %vm490, %v540, %v542
    %v546 = vsel %vm66, %v538, 0
    %548 = vmatprep.subr.bf16.mxu0 0
    %549 = vmatpush1.bf16.msra.mxu0 %v543
    %550 = vmatprep.subr.bf16.mxu0 0
    %551 = vmatpush1.bf16.msra.mxu0 0
    %552 = vmatprep.subr.bf16.mxu0 0
    %553 = vmatpush1.bf16.msra.mxu0 0
    %554 = vmatprep.subr.bf16.mxu0 0
    %555 = vmatpush1.bf16.msra.mxu0 0
    %556 = vmatprep.subr.bf16.mxu0 0
    %557 = vmatpush1.bf16.msra.mxu0 0
    %558 = vmatprep.subr.bf16.mxu0 0
    %559 = vmatpush1.bf16.msra.mxu0 0
    %560 = vmatprep.subr.bf16.mxu0 0
    %561 = vmatpush1.bf16.msra.mxu0 0
    %562 = vmatprep.subr.bf16.mxu0 0
    %563 = vmatpush1.bf16.msra.mxu0 0
    %564 = vmatprep.subr.bf16.mxu0 0
    %565 = vmatpush1.bf16.msra.mxu0 0
    %566 = vmatprep.subr.bf16.mxu0 0
    %567 = vmatpush1.bf16.msra.mxu0 0
    %568 = vmatprep.subr.bf16.mxu0 0
    %569 = vmatpush1.bf16.msra.mxu0 0
    %570 = vmatprep.subr.bf16.mxu0 0
    %571 = vmatpush1.bf16.msra.mxu0 0
    %572 = vmatprep.subr.bf16.mxu0 0
    %573 = vmatpush1.bf16.msra.mxu0 0
    %574 = vmatprep.subr.bf16.mxu0 0
    %575 = vmatpush1.bf16.msra.mxu0 0
    %576 = vmatprep.subr.bf16.mxu0 0
    %577 = vmatpush1.bf16.msra.mxu0 0
    %578 = vmatprep.subr.bf16.mxu0 0
    %579 = vmatpush1.bf16.msra.mxu0 0
    %580 = vmatprep.mubr.bf16.mxu0 0
    %581 = vmatmul.mubr.bf16.gmra.mrb[0].mxu0 %v546
    %v582 = vpop.f32.mrb[0].mxu0
    %v583 = vadd.f32 0.0, %v582
    %v584 = vpop.f32.mrb[0].mxu0
    %v585 = vpop.f32.mrb[0].mxu0
    %v586 = vpop.f32.mrb[0].mxu0
    %587 = vdwg.mxu0
    %v588 = vadd.f32 %v536, %v583
    %s589 = scalar_lea.vmem [#allocation2], 40
    %v590 = vld [vmem:[%s589] sm:$0xf]
    %591 = vrot.lane.b32.xlu0 %v114, 119
    %v592 = vpop.permute.xlu0 %591
    %593 = vrot.lane.b32.xlu0 %v163, 119
    %v594 = vpop.permute.xlu0 %593
    %vm595 = vcmask 973824
    %v596 = vsel %vm595, %v592, %v594
    %v599 = vsel %vm66, %v590, 0
    %601 = vmatprep.subr.bf16.mxu0 0
    %602 = vmatpush1.bf16.msra.mxu0 %v596
    %603 = vmatprep.subr.bf16.mxu0 0
    %604 = vmatpush1.bf16.msra.mxu0 0
    %605 = vmatprep.subr.bf16.mxu0 0
    %606 = vmatpush1.bf16.msra.mxu0 0
    %607 = vmatprep.subr.bf16.mxu0 0
    %608 = vmatpush1.bf16.msra.mxu0 0
    %609 = vmatprep.subr.bf16.mxu0 0
    %610 = vmatpush1.bf16.msra.mxu0 0
    %611 = vmatprep.subr.bf16.mxu0 0
    %612 = vmatpush1.bf16.msra.mxu0 0
    %613 = vmatprep.subr.bf16.mxu0 0
    %614 = vmatpush1.bf16.msra.mxu0 0
    %615 = vmatprep.subr.bf16.mxu0 0
    %616 = vmatpush1.bf16.msra.mxu0 0
    %617 = vmatprep.subr.bf16.mxu0 0
    %618 = vmatpush1.bf16.msra.mxu0 0
    %619 = vmatprep.subr.bf16.mxu0 0
    %620 = vmatpush1.bf16.msra.mxu0 0
    %621 = vmatprep.subr.bf16.mxu0 0
    %622 = vmatpush1.bf16.msra.mxu0 0
    %623 = vmatprep.subr.bf16.mxu0 0
    %624 = vmatpush1.bf16.msra.mxu0 0
    %625 = vmatprep.subr.bf16.mxu0 0
    %626 = vmatpush1.bf16.msra.mxu0 0
    %627 = vmatprep.subr.bf16.mxu0 0
    %628 = vmatpush1.bf16.msra.mxu0 0
    %629 = vmatprep.subr.bf16.mxu0 0
    %630 = vmatpush1.bf16.msra.mxu0 0
    %631 = vmatprep.subr.bf16.mxu0 0
    %632 = vmatpush1.bf16.msra.mxu0 0
    %633 = vmatprep.mubr.bf16.mxu0 0
    %634 = vmatmul.mubr.bf16.gmra.mrb[0].mxu0 %v599
    %v635 = vpop.f32.mrb[0].mxu0
    %v636 = vadd.f32 0.0, %v635
    %v637 = vpop.f32.mrb[0].mxu0
    %v638 = vpop.f32.mrb[0].mxu0
    %v639 = vpop.f32.mrb[0].mxu0
    %640 = vdwg.mxu0
    %v641 = vadd.f32 %v588, %v636
    %s642 = scalar_lea.vmem [#allocation2], 44
    %v643 = vld [vmem:[%s642] sm:$0xf]
    %644 = vrot.lane.b32.xlu0 %v64, 119
    %v645 = vpop.permute.xlu0 %644
    %646 = vrot.lane.b32.xlu0 %v219, 119
    %v647 = vpop.permute.xlu0 %646
    %v648 = vsel %vm595, %v645, %v647
    %v651 = vsel %vm66, %v643, 0
    %653 = vmatprep.subr.bf16.mxu0 0
    %654 = vmatpush1.bf16.msra.mxu0 %v648
    %655 = vmatprep.subr.bf16.mxu0 0
    %656 = vmatpush1.bf16.msra.mxu0 0
    %657 = vmatprep.subr.bf16.mxu0 0
    %658 = vmatpush1.bf16.msra.mxu0 0
    %659 = vmatprep.subr.bf16.mxu0 0
    %660 = vmatpush1.bf16.msra.mxu0 0
    %661 = vmatprep.subr.bf16.mxu0 0
    %662 = vmatpush1.bf16.msra.mxu0 0
    %663 = vmatprep.subr.bf16.mxu0 0
    %664 = vmatpush1.bf16.msra.mxu0 0
    %665 = vmatprep.subr.bf16.mxu0 0
    %666 = vmatpush1.bf16.msra.mxu0 0
    %667 = vmatprep.subr.bf16.mxu0 0
    %668 = vmatpush1.bf16.msra.mxu0 0
    %669 = vmatprep.subr.bf16.mxu0 0
    %670 = vmatpush1.bf16.msra.mxu0 0
    %671 = vmatprep.subr.bf16.mxu0 0
    %672 = vmatpush1.bf16.msra.mxu0 0
    %673 = vmatprep.subr.bf16.mxu0 0
    %674 = vmatpush1.bf16.msra.mxu0 0
    %675 = vmatprep.subr.bf16.mxu0 0
    %676 = vmatpush1.bf16.msra.mxu0 0
    %677 = vmatprep.subr.bf16.mxu0 0
    %678 = vmatpush1.bf16.msra.mxu0 0
    %679 = vmatprep.subr.bf16.mxu0 0
    %680 = vmatpush1.bf16.msra.mxu0 0
    %681 = vmatprep.subr.bf16.mxu0 0
    %682 = vmatpush1.bf16.msra.mxu0 0
    %683 = vmatprep.subr.bf16.mxu0 0
    %684 = vmatpush1.bf16.msra.mxu0 0
    %685 = vmatprep.mubr.bf16.mxu0 0
    %686 = vmatmul.mubr.bf16.gmra.mrb[0].mxu0 %v651
    %v687 = vpop.f32.mrb[0].mxu0
    %v688 = vadd.f32 0.0, %v687
    %v689 = vpop.f32.mrb[0].mxu0
    %v690 = vpop.f32.mrb[0].mxu0
    %v691 = vpop.f32.mrb[0].mxu0
    %692 = vdwg.mxu0
    %v693 = vadd.f32 %v641, %v688
    %s694 = scalar_lea.vmem [#allocation2], 48
    %v695 = vld [vmem:[%s694] sm:$0xf]
    %696 = vrot.lane.b32.xlu0 %v276, 120
    %v697 = vpop.permute.xlu0 %696
    %698 = vrot.lane.b32.xlu0 %v378, 120
    %v699 = vpop.permute.xlu0 %698
    %v700 = vsel %vm490, %v697, %v699
    %v703 = vsel %vm66, %v695, 0
    %705 = vmatprep.subr.bf16.mxu0 0
    %706 = vmatpush1.bf16.msra.mxu0 %v700
    %707 = vmatprep.subr.bf16.mxu0 0
    %708 = vmatpush1.bf16.msra.mxu0 0
    %709 = vmatprep.subr.bf16.mxu0 0
    %710 = vmatpush1.bf16.msra.mxu0 0
    %711 = vmatprep.subr.bf16.mxu0 0
    %712 = vmatpush1.bf16.msra.mxu0 0
    %713 = vmatprep.subr.bf16.mxu0 0
    %714 = vmatpush1.bf16.msra.mxu0 0
    %715 = vmatprep.subr.bf16.mxu0 0
    %716 = vmatpush1.bf16.msra.mxu0 0
    %717 = vmatprep.subr.bf16.mxu0 0
    %718 = vmatpush1.bf16.msra.mxu0 0
    %719 = vmatprep.subr.bf16.mxu0 0
    %720 = vmatpush1.bf16.msra.mxu0 0
    %721 = vmatprep.subr.bf16.mxu0 0
    %722 = vmatpush1.bf16.msra.mxu0 0
    %723 = vmatprep.subr.bf16.mxu0 0
    %724 = vmatpush1.bf16.msra.mxu0 0
    %725 = vmatprep.subr.bf16.mxu0 0
    %726 = vmatpush1.bf16.msra.mxu0 0
    %727 = vmatprep.subr.bf16.mxu0 0
    %728 = vmatpush1.bf16.msra.mxu0 0
    %729 = vmatprep.subr.bf16.mxu0 0
    %730 = vmatpush1.bf16.msra.mxu0 0
    %731 = vmatprep.subr.bf16.mxu0 0
    %732 = vmatpush1.bf16.msra.mxu0 0
    %733 = vmatprep.subr.bf16.mxu0 0
    %734 = vmatpush1.bf16.msra.mxu0 0
    %735 = vmatprep.subr.bf16.mxu0 0
    %736 = vmatpush1.bf16.msra.mxu0 0
    %737 = vmatprep.mubr.bf16.mxu0 0
    %738 = vmatmul.mubr.bf16.gmra.mrb[0].mxu0 %v703
    %v739 = vpop.f32.mrb[0].mxu0
    %v740 = vadd.f32 0.0, %v739
    %v741 = vpop.f32.mrb[0].mxu0
    %v742 = vpop.f32.mrb[0].mxu0
    %v743 = vpop.f32.mrb[0].mxu0
    %744 = vdwg.mxu0
    %v745 = vadd.f32 %v693, %v740
    %s746 = scalar_lea.vmem [#allocation2], 52
    %v747 = vld [vmem:[%s746] sm:$0xf]
    %748 = vrot.lane.b32.xlu0 %v328, 120
    %v749 = vpop.permute.xlu0 %748
    %750 = vrot.lane.b32.xlu0 %v433, 120
    %v751 = vpop.permute.xlu0 %750
    %v752 = vsel %vm490, %v749, %v751
    %v755 = vsel %vm66, %v747, 0
    %757 = vmatprep.subr.bf16.mxu0 0
    %758 = vmatpush1.bf16.msra.mxu0 %v752
    %759 = vmatprep.subr.bf16.mxu0 0
    %760 = vmatpush1.bf16.msra.mxu0 0
    %761 = vmatprep.subr.bf16.mxu0 0
    %762 = vmatpush1.bf16.msra.mxu0 0
    %763 = vmatprep.subr.bf16.mxu0 0
    %764 = vmatpush1.bf16.msra.mxu0 0
    %765 = vmatprep.subr.bf16.mxu0 0
    %766 = vmatpush1.bf16.msra.mxu0 0
    %767 = vmatprep.subr.bf16.mxu0 0
    %768 = vmatpush1.bf16.msra.mxu0 0
    %769 = vmatprep.subr.bf16.mxu0 0
    %770 = vmatpush1.bf16.msra.mxu0 0
    %771 = vmatprep.subr.bf16.mxu0 0
    %772 = vmatpush1.bf16.msra.mxu0 0
    %773 = vmatprep.subr.bf16.mxu0 0
    %774 = vmatpush1.bf16.msra.mxu0 0
    %775 = vmatprep.subr.bf16.mxu0 0
    %776 = vmatpush1.bf16.msra.mxu0 0
    %777 = vmatprep.subr.bf16.mxu0 0
    %778 = vmatpush1.bf16.msra.mxu0 0
    %779 = vmatprep.subr.bf16.mxu0 0
    %780 = vmatpush1.bf16.msra.mxu0 0
    %781 = vmatprep.subr.bf16.mxu0 0
    %782 = vmatpush1.bf16.msra.mxu0 0
    %783 = vmatprep.subr.bf16.mxu0 0
    %784 = vmatpush1.bf16.msra.mxu0 0
    %785 = vmatprep.subr.bf16.mxu0 0
    %786 = vmatpush1.bf16.msra.mxu0 0
    %787 = vmatprep.subr.bf16.mxu0 0
    %788 = vmatpush1.bf16.msra.mxu0 0
    %789 = vmatprep.mubr.bf16.mxu0 0
    %790 = vmatmul.mubr.bf16.gmra.mrb[0].mxu0 %v755
    %v791 = vpop.f32.mrb[0].mxu0
    %v792 = vadd.f32 0.0, %v791
    %v793 = vpop.f32.mrb[0].mxu0
    %v794 = vpop.f32.mrb[0].mxu0
    %v795 = vpop.f32.mrb[0].mxu0
    %796 = vdwg.mxu0
    %v797 = vadd.f32 %v745, %v792
    %s798 = scalar_lea.vmem [#allocation2], 56
    %v799 = vld [vmem:[%s798] sm:$0xf]
    %800 = vrot.lane.b32.xlu0 %v276, 119
    %v801 = vpop.permute.xlu0 %800
    %802 = vrot.lane.b32.xlu0 %v378, 119
    %v803 = vpop.permute.xlu0 %802
    %v804 = vsel %vm595, %v801, %v803
    %v807 = vsel %vm66, %v799, 0
    %809 = vmatprep.subr.bf16.mxu0 0
    %810 = vmatpush1.bf16.msra.mxu0 %v804
    %811 = vmatprep.subr.bf16.mxu0 0
    %812 = vmatpush1.bf16.msra.mxu0 0
    %813 = vmatprep.subr.bf16.mxu0 0
    %814 = vmatpush1.bf16.msra.mxu0 0
    %815 = vmatprep.subr.bf16.mxu0 0
    %816 = vmatpush1.bf16.msra.mxu0 0
    %817 = vmatprep.subr.bf16.mxu0 0
    %818 = vmatpush1.bf16.msra.mxu0 0
    %819 = vmatprep.subr.bf16.mxu0 0
    %820 = vmatpush1.bf16.msra.mxu0 0
    %821 = vmatprep.subr.bf16.mxu0 0
    %822 = vmatpush1.bf16.msra.mxu0 0
    %823 = vmatprep.subr.bf16.mxu0 0
    %824 = vmatpush1.bf16.msra.mxu0 0
    %825 = vmatprep.subr.bf16.mxu0 0
    %826 = vmatpush1.bf16.msra.mxu0 0
    %827 = vmatprep.subr.bf16.mxu0 0
    %828 = vmatpush1.bf16.msra.mxu0 0
    %829 = vmatprep.subr.bf16.mxu0 0
    %830 = vmatpush1.bf16.msra.mxu0 0
    %831 = vmatprep.subr.bf16.mxu0 0
    %832 = vmatpush1.bf16.msra.mxu0 0
    %833 = vmatprep.subr.bf16.mxu0 0
    %834 = vmatpush1.bf16.msra.mxu0 0
    %835 = vmatprep.subr.bf16.mxu0 0
    %836 = vmatpush1.bf16.msra.mxu0 0
    %837 = vmatprep.subr.bf16.mxu0 0
    %838 = vmatpush1.bf16.msra.mxu0 0
    %839 = vmatprep.subr.bf16.mxu0 0
    %840 = vmatpush1.bf16.msra.mxu0 0
    %841 = vmatprep.mubr.bf16.mxu0 0
    %842 = vmatmul.mubr.bf16.gmra.mrb[0].mxu0 %v807
    %v843 = vpop.f32.mrb[0].mxu0
    %v844 = vadd.f32 0.0, %v843
    %v845 = vpop.f32.mrb[0].mxu0
    %v846 = vpop.f32.mrb[0].mxu0
    %v847 = vpop.f32.mrb[0].mxu0
    %848 = vdwg.mxu0
    %v849 = vadd.f32 %v797, %v844
    %s850 = scalar_lea.vmem [#allocation2], 60
    %v851 = vld [vmem:[%s850] sm:$0xf]
    %852 = vrot.lane.b32.xlu0 %v328, 119
    %v853 = vpop.permute.xlu0 %852
    %854 = vrot.lane.b32.xlu0 %v433, 119
    %v855 = vpop.permute.xlu0 %854
    %v856 = vsel %vm595, %v853, %v855
    %v859 = vsel %vm66, %v851, 0
    %861 = vmatprep.subr.bf16.mxu0 0
    %862 = vmatpush1.bf16.msra.mxu0 %v856
    %863 = vmatprep.subr.bf16.mxu0 0
    %864 = vmatpush1.bf16.msra.mxu0 0
    %865 = vmatprep.subr.bf16.mxu0 0
    %866 = vmatpush1.bf16.msra.mxu0 0
    %867 = vmatprep.subr.bf16.mxu0 0
    %868 = vmatpush1.bf16.msra.mxu0 0
    %869 = vmatprep.subr.bf16.mxu0 0
    %870 = vmatpush1.bf16.msra.mxu0 0
    %871 = vmatprep.subr.bf16.mxu0 0
    %872 = vmatpush1.bf16.msra.mxu0 0
    %873 = vmatprep.subr.bf16.mxu0 0
    %874 = vmatpush1.bf16.msra.mxu0 0
    %875 = vmatprep.subr.bf16.mxu0 0
    %876 = vmatpush1.bf16.msra.mxu0 0
    %877 = vmatprep.subr.bf16.mxu0 0
    %878 = vmatpush1.bf16.msra.mxu0 0
    %879 = vmatprep.subr.bf16.mxu0 0
    %880 = vmatpush1.bf16.msra.mxu0 0
    %881 = vmatprep.subr.bf16.mxu0 0
    %882 = vmatpush1.bf16.msra.mxu0 0
    %883 = vmatprep.subr.bf16.mxu0 0
    %884 = vmatpush1.bf16.msra.mxu0 0
    %885 = vmatprep.subr.bf16.mxu0 0
    %886 = vmatpush1.bf16.msra.mxu0 0
    %887 = vmatprep.subr.bf16.mxu0 0
    %888 = vmatpush1.bf16.msra.mxu0 0
    %889 = vmatprep.subr.bf16.mxu0 0
    %890 = vmatpush1.bf16.msra.mxu0 0
    %891 = vmatprep.subr.bf16.mxu0 0
    %892 = vmatpush1.bf16.msra.mxu0 0
    %893 = vmatprep.mubr.bf16.mxu0 0
    %894 = vmatmul.mubr.bf16.gmra.mrb[0].mxu0 %v859
    %v895 = vpop.f32.mrb[0].mxu0
    %v896 = vadd.f32 0.0, %v895
    %v897 = vpop.f32.mrb[0].mxu0
    %v898 = vpop.f32.mrb[0].mxu0
    %v899 = vpop.f32.mrb[0].mxu0
    %900 = vdwg.mxu0
    %v901 = vadd.f32 %v849, %v896
    %v903 = vlaneseq
    %v904 = vshrl.u32 %v903, 7
    %v905 = vsub.s32 0, %v904
    %v906 = vrot.slane %v47, %v905
    %v908 = vmul.f32 %v901, %v906
    %909 = vadd.xlane.f32.xlu0 %v908
    %v910 = vpop.xlane.xlu0 %909
    %v911 = vmul.f32 %v910, 0.020408163
    %v912 = vsub.f32 %v901, %v911
    %v913 = vmul.f32 %v912, %v906
    %v914 = vmul.f32 %v913, %v913
    %915 = vadd.xlane.f32.xlu0 %v914
    %v916 = vpop.xlane.xlu0 %915
    %v917 = vmul.f32 %v916, 0.020408163
    %v918 = vadd.f32 %v917, 1e-05
    %v919 = vrsqrt.pop %v918
    %v920 = vmul.f32 %v48, %v919
    %v921 = vmul.f32 %v911, %v920
    %923 = vrot.lane.b32.xlu0 %v921, 1
    %v924 = vpop.permute.xlu0 %923
    %v926 = vsub.f32 %v48, %v924
    %928 = vset.pattern.permute.xlu0 0
    %929 = vperm.xlu0 %928, %v920
    %v930 = vpop.permute.xlu0 %929
    %v932 = vmul.f32 %v901, %v930
    %934 = vset.pattern.permute.xlu0 1
    %935 = vperm.xlu0 %934, %v926
    %v936 = vpop.permute.xlu0 %935
    %v938 = vadd.f32 %v932, %v936
    %vm939 = vcmp.gt.f32.partialorder %v938, 0.0
    %v940 = vmul.f32 %v938, 0.2
    %v941 = vsel %vm939, %v938, %v940
    %v942 = vpack.c.bf16 %v941, %v941
    %943 = vst [vmem:[#allocation7] sm:$0xf] %v942
    %s944 = scalar_lea.vmem [#allocation5], 64
    %v945 = vld [vmem:[%s944] sm:$0xff]
    %v946 = vld [vmem:[%s944 + $0x8] sm:$0xff]
    %v947 = vld [vmem:[%s944 + $0x10] sm:$0xff]
    %v948 = vld [vmem:[%s944 + $0x18] sm:$0xff]
    %v949 = vld [vmem:[%s944 + $0x20] sm:$0xff]
    %v950 = vld [vmem:[%s944 + $0x28] sm:$0xff]
    %v951 = vld [vmem:[%s944 + $0x30] sm:$0xff]
    %v952 = vld [vmem:[%s944 + $0x38] sm:$0xff]
    %v953 = vld [vmem:[#allocation2] sm:$0xf]
    %v954 = vld [vmem:[%s58] sm:$0xf]
    %v957 = vunpack.c.l.b16 %v947
    %v958 = vunpack.c.l.b16 %v948
    %v959 = vpack.c.b16 %v958, %v957
    %v962 = vsel %vm66, %v954, 0
    %964 = vmatprep.subr.bf16.mxu0 0
    %965 = vmatpush1.bf16.msra.mxu0 %v959
    %966 = vmatprep.subr.bf16.mxu0 0
    %967 = vmatpush1.bf16.msra.mxu0 0
    %968 = vmatprep.subr.bf16.mxu0 0
    %969 = vmatpush1.bf16.msra.mxu0 0
    %970 = vmatprep.subr.bf16.mxu0 0
    %971 = vmatpush1.bf16.msra.mxu0 0
    %972 = vmatprep.subr.bf16.mxu0 0
    %973 = vmatpush1.bf16.msra.mxu0 0
    %974 = vmatprep.subr.bf16.mxu0 0
    %975 = vmatpush1.bf16.msra.mxu0 0
    %976 = vmatprep.subr.bf16.mxu0 0
    %977 = vmatpush1.bf16.msra.mxu0 0
    %978 = vmatprep.subr.bf16.mxu0 0
    %979 = vmatpush1.bf16.msra.mxu0 0
    %980 = vmatprep.subr.bf16.mxu0 0
    %981 = vmatpush1.bf16.msra.mxu0 0
    %982 = vmatprep.subr.bf16.mxu0 0
    %983 = vmatpush1.bf16.msra.mxu0 0
    %984 = vmatprep.subr.bf16.mxu0 0
    %985 = vmatpush1.bf16.msra.mxu0 0
    %986 = vmatprep.subr.bf16.mxu0 0
    %987 = vmatpush1.bf16.msra.mxu0 0
    %988 = vmatprep.subr.bf16.mxu0 0
    %989 = vmatpush1.bf16.msra.mxu0 0
    %990 = vmatprep.subr.bf16.mxu0 0
    %991 = vmatpush1.bf16.msra.mxu0 0
    %992 = vmatprep.subr.bf16.mxu0 0
    %993 = vmatpush1.bf16.msra.mxu0 0
    %994 = vmatprep.subr.bf16.mxu0 0
    %995 = vmatpush1.bf16.msra.mxu0 0
    %996 = vmatprep.mubr.bf16.mxu0 0
    %997 = vmatmul.mubr.bf16.gmra.mrb[0].mxu0 %v962
    %v998 = vpop.f32.mrb[0].mxu0
    %v999 = vadd.f32 0.0, %v998
    %v1000 = vpop.f32.mrb[0].mxu0
    %v1001 = vpop.f32.mrb[0].mxu0
    %v1002 = vpop.f32.mrb[0].mxu0
    %1003 = vdwg.mxu0
    %v1006 = vunpack.c.l.b16 %v945
    %v1007 = vunpack.c.l.b16 %v946
    %v1008 = vpack.c.b16 %v1007, %v1006
    %v1011 = vsel %vm66, %v953, 0
    %1013 = vmatprep.subr.bf16.mxu0 0
    %1014 = vmatpush1.bf16.msra.mxu0 %v1008
    %1015 = vmatprep.subr.bf16.mxu0 0
    %1016 = vmatpush1.bf16.msra.mxu0 0
    %1017 = vmatprep.subr.bf16.mxu0 0
    %1018 = vmatpush1.bf16.msra.mxu0 0
    %1019 = vmatprep.subr.bf16.mxu0 0
    %1020 = vmatpush1.bf16.msra.mxu0 0
    %1021 = vmatprep.subr.bf16.mxu0 0
    %1022 = vmatpush1.bf16.msra.mxu0 0
    %1023 = vmatprep.subr.bf16.mxu0 0
    %1024 = vmatpush1.bf16.msra.mxu0 0
    %1025 = vmatprep.subr.bf16.mxu0 0
    %1026 = vmatpush1.bf16.msra.mxu0 0
    %1027 = vmatprep.subr.bf16.mxu0 0
    %1028 = vmatpush1.bf16.msra.mxu0 0
    %1029 = vmatprep.subr.bf16.mxu0 0
    %1030 = vmatpush1.bf16.msra.mxu0 0
    %1031 = vmatprep.subr.bf16.mxu0 0
    %1032 = vmatpush1.bf16.msra.mxu0 0
    %1033 = vmatprep.subr.bf16.mxu0 0
    %1034 = vmatpush1.bf16.msra.mxu0 0
    %1035 = vmatprep.subr.bf16.mxu0 0
    %1036 = vmatpush1.bf16.msra.mxu0 0
    %1037 = vmatprep.subr.bf16.mxu0 0
    %1038 = vmatpush1.bf16.msra.mxu0 0
    %1039 = vmatprep.subr.bf16.mxu0 0
    %1040 = vmatpush1.bf16.msra.mxu0 0
    %1041 = vmatprep.subr.bf16.mxu0 0
    %1042 = vmatpush1.bf16.msra.mxu0 0
    %1043 = vmatprep.subr.bf16.mxu0 0
    %1044 = vmatpush1.bf16.msra.mxu0 0
    %1045 = vmatprep.mubr.bf16.mxu0 0
    %1046 = vmatmul.mubr.bf16.gmra.mrb[0].mxu0 %v1011
    %v1047 = vpop.f32.mrb[0].mxu0
    %v1048 = vadd.f32 %v999, %v1047
    %v1049 = vpop.f32.mrb[0].mxu0
    %v1050 = vpop.f32.mrb[0].mxu0
    %v1051 = vpop.f32.mrb[0].mxu0
    %1052 = vdwg.mxu0
    %v1053 = vld [vmem:[%s159] sm:$0xf]
    %v1054 = vunpack.c.h.b16 %v945
    %v1055 = vunpack.c.h.b16 %v946
    %v1056 = vpack.c.b16 %v1055, %v1054
    %1057 = vrot.lane.b32.xlu0 %v1008, 127
    %v1058 = vpop.permute.xlu0 %1057
    %1059 = vrot.lane.b32.xlu0 %v1056, 127
    %v1060 = vpop.permute.xlu0 %1059
    %v1061 = vsel %vm168, %v1058, %v1060
    %v1064 = vsel %vm66, %v1053, 0
    %1066 = vmatprep.subr.bf16.mxu0 0
    %1067 = vmatpush1.bf16.msra.mxu0 %v1061
    %1068 = vmatprep.subr.bf16.mxu0 0
    %1069 = vmatpush1.bf16.msra.mxu0 0
    %1070 = vmatprep.subr.bf16.mxu0 0
    %1071 = vmatpush1.bf16.msra.mxu0 0
    %1072 = vmatprep.subr.bf16.mxu0 0
    %1073 = vmatpush1.bf16.msra.mxu0 0
    %1074 = vmatprep.subr.bf16.mxu0 0
    %1075 = vmatpush1.bf16.msra.mxu0 0
    %1076 = vmatprep.subr.bf16.mxu0 0
    %1077 = vmatpush1.bf16.msra.mxu0 0
    %1078 = vmatprep.subr.bf16.mxu0 0
    %1079 = vmatpush1.bf16.msra.mxu0 0
    %1080 = vmatprep.subr.bf16.mxu0 0
    %1081 = vmatpush1.bf16.msra.mxu0 0
    %1082 = vmatprep.subr.bf16.mxu0 0
    %1083 = vmatpush1.bf16.msra.mxu0 0
    %1084 = vmatprep.subr.bf16.mxu0 0
    %1085 = vmatpush1.bf16.msra.mxu0 0
    %1086 = vmatprep.subr.bf16.mxu0 0
    %1087 = vmatpush1.bf16.msra.mxu0 0
    %1088 = vmatprep.subr.bf16.mxu0 0
    %1089 = vmatpush1.bf16.msra.mxu0 0
    %1090 = vmatprep.subr.bf16.mxu0 0
    %1091 = vmatpush1.bf16.msra.mxu0 0
    %1092 = vmatprep.subr.bf16.mxu0 0
    %1093 = vmatpush1.bf16.msra.mxu0 0
    %1094 = vmatprep.subr.bf16.mxu0 0
    %1095 = vmatpush1.bf16.msra.mxu0 0
    %1096 = vmatprep.subr.bf16.mxu0 0
    %1097 = vmatpush1.bf16.msra.mxu0 0
    %1098 = vmatprep.mubr.bf16.mxu0 0
    %1099 = vmatmul.mubr.bf16.gmra.mrb[0].mxu0 %v1064
    %v1100 = vpop.f32.mrb[0].mxu0
    %v1101 = vadd.f32 0.0, %v1100
    %v1102 = vpop.f32.mrb[0].mxu0
    %v1103 = vpop.f32.mrb[0].mxu0
    %v1104 = vpop.f32.mrb[0].mxu0
    %1105 = vdwg.mxu0
    %v1106 = vadd.f32 %v1048, %v1101
    %v1107 = vld [vmem:[%s215] sm:$0xf]
    %v1108 = vunpack.c.h.b16 %v947
    %v1109 = vunpack.c.h.b16 %v948
    %v1110 = vpack.c.b16 %v1109, %v1108
    %1111 = vrot.lane.b32.xlu0 %v959, 127
    %v1112 = vpop.permute.xlu0 %1111
    %1113 = vrot.lane.b32.xlu0 %v1110, 127
    %v1114 = vpop.permute.xlu0 %1113
    %v1115 = vsel %vm168, %v1112, %v1114
    %v1118 = vsel %vm66, %v1107, 0
    %1120 = vmatprep.subr.bf16.mxu0 0
    %1121 = vmatpush1.bf16.msra.mxu0 %v1115
    %1122 = vmatprep.subr.bf16.mxu0 0
    %1123 = vmatpush1.bf16.msra.mxu0 0
    %1124 = vmatprep.subr.bf16.mxu0 0
    %1125 = vmatpush1.bf16.msra.mxu0 0
    %1126 = vmatprep.subr.bf16.mxu0 0
    %1127 = vmatpush1.bf16.msra.mxu0 0
    %1128 = vmatprep.subr.bf16.mxu0 0
    %1129 = vmatpush1.bf16.msra.mxu0 0
    %1130 = vmatprep.subr.bf16.mxu0 0
    %1131 = vmatpush1.bf16.msra.mxu0 0
    %1132 = vmatprep.subr.bf16.mxu0 0
    %1133 = vmatpush1.bf16.msra.mxu0 0
    %1134 = vmatprep.subr.bf16.mxu0 0
    %1135 = vmatpush1.bf16.msra.mxu0 0
    %1136 = vmatprep.subr.bf16.mxu0 0
    %1137 = vmatpush1.bf16.msra.mxu0 0
    %1138 = vmatprep.subr.bf16.mxu0 0
    %1139 = vmatpush1.bf16.msra.mxu0 0
    %1140 = vmatprep.subr.bf16.mxu0 0
    %1141 = vmatpush1.bf16.msra.mxu0 0
    %1142 = vmatprep.subr.bf16.mxu0 0
    %1143 = vmatpush1.bf16.msra.mxu0 0
    %1144 = vmatprep.subr.bf16.mxu0 0
    %1145 = vmatpush1.bf16.msra.mxu0 0
    %1146 = vmatprep.subr.bf16.mxu0 0
    %1147 = vmatpush1.bf16.msra.mxu0 0
    %1148 = vmatprep.subr.bf16.mxu0 0
    %1149 = vmatpush1.bf16.msra.mxu0 0
    %1150 = vmatprep.subr.bf16.mxu0 0
    %1151 = vmatpush1.bf16.msra.mxu0 0
    %1152 = vmatprep.mubr.bf16.mxu0 0
    %1153 = vmatmul.mubr.bf16.gmra.mrb[0].mxu0 %v1118
    %v1154 = vpop.f32.mrb[0].mxu0
    %v1155 = vadd.f32 0.0, %v1154
    %v1156 = vpop.f32.mrb[0].mxu0
    %v1157 = vpop.f32.mrb[0].mxu0
    %v1158 = vpop.f32.mrb[0].mxu0
    %1159 = vdwg.mxu0
    %v1160 = vadd.f32 %v1106, %v1155
    %v1161 = vld [vmem:[%s270] sm:$0xf]
    %v1164 = vunpack.c.l.b16 %v949
    %v1165 = vunpack.c.l.b16 %v950
    %v1166 = vpack.c.b16 %v1165, %v1164
    %v1169 = vsel %vm66, %v1161, 0
    %1171 = vmatprep.subr.bf16.mxu0 0
    %1172 = vmatpush1.bf16.msra.mxu0 %v1166
    %1173 = vmatprep.subr.bf16.mxu0 0
    %1174 = vmatpush1.bf16.msra.mxu0 0
    %1175 = vmatprep.subr.bf16.mxu0 0
    %1176 = vmatpush1.bf16.msra.mxu0 0
    %1177 = vmatprep.subr.bf16.mxu0 0
    %1178 = vmatpush1.bf16.msra.mxu0 0
    %1179 = vmatprep.subr.bf16.mxu0 0
    %1180 = vmatpush1.bf16.msra.mxu0 0
    %1181 = vmatprep.subr.bf16.mxu0 0
    %1182 = vmatpush1.bf16.msra.mxu0 0
    %1183 = vmatprep.subr.bf16.mxu0 0
    %1184 = vmatpush1.bf16.msra.mxu0 0
    %1185 = vmatprep.subr.bf16.mxu0 0
    %1186 = vmatpush1.bf16.msra.mxu0 0
    %1187 = vmatprep.subr.bf16.mxu0 0
    %1188 = vmatpush1.bf16.msra.mxu0 0
    %1189 = vmatprep.subr.bf16.mxu0 0
    %1190 = vmatpush1.bf16.msra.mxu0 0
    %1191 = vmatprep.subr.bf16.mxu0 0
    %1192 = vmatpush1.bf16.msra.mxu0 0
    %1193 = vmatprep.subr.bf16.mxu0 0
    %1194 = vmatpush1.bf16.msra.mxu0 0
    %1195 = vmatprep.subr.bf16.mxu0 0
    %1196 = vmatpush1.bf16.msra.mxu0 0
    %1197 = vmatprep.subr.bf16.mxu0 0
    %1198 = vmatpush1.bf16.msra.mxu0 0
    %1199 = vmatprep.subr.bf16.mxu0 0
    %1200 = vmatpush1.bf16.msra.mxu0 0
    %1201 = vmatprep.subr.bf16.mxu0 0
    %1202 = vmatpush1.bf16.msra.mxu0 0
    %1203 = vmatprep.mubr.bf16.mxu0 0
    %1204 = vmatmul.mubr.bf16.gmra.mrb[0].mxu0 %v1169
    %v1205 = vpop.f32.mrb[0].mxu0
    %v1206 = vadd.f32 0.0, %v1205
    %v1207 = vpop.f32.mrb[0].mxu0
    %v1208 = vpop.f32.mrb[0].mxu0
    %v1209 = vpop.f32.mrb[0].mxu0
    %1210 = vdwg.mxu0
    %v1211 = vadd.f32 %v1160, %v1206
    %v1212 = vld [vmem:[%s322] sm:$0xf]
    %v1215 = vunpack.c.l.b16 %v951
    %v1216 = vunpack.c.l.b16 %v952
    %v1217 = vpack.c.b16 %v1216, %v1215
    %v1220 = vsel %vm66, %v1212, 0
    %1222 = vmatprep.subr.bf16.mxu0 0
    %1223 = vmatpush1.bf16.msra.mxu0 %v1217
    %1224 = vmatprep.subr.bf16.mxu0 0
    %1225 = vmatpush1.bf16.msra.mxu0 0
    %1226 = vmatprep.subr.bf16.mxu0 0
    %1227 = vmatpush1.bf16.msra.mxu0 0
    %1228 = vmatprep.subr.bf16.mxu0 0
    %1229 = vmatpush1.bf16.msra.mxu0 0
    %1230 = vmatprep.subr.bf16.mxu0 0
    %1231 = vmatpush1.bf16.msra.mxu0 0
    %1232 = vmatprep.subr.bf16.mxu0 0
    %1233 = vmatpush1.bf16.msra.mxu0 0
    %1234 = vmatprep.subr.bf16.mxu0 0
    %1235 = vmatpush1.bf16.msra.mxu0 0
    %1236 = vmatprep.subr.bf16.mxu0 0
    %1237 = vmatpush1.bf16.msra.mxu0 0
    %1238 = vmatprep.subr.bf16.mxu0 0
    %1239 = vmatpush1.bf16.msra.mxu0 0
    %1240 = vmatprep.subr.bf16.mxu0 0
    %1241 = vmatpush1.bf16.msra.mxu0 0
    %1242 = vmatprep.subr.bf16.mxu0 0
    %1243 = vmatpush1.bf16.msra.mxu0 0
    %1244 = vmatprep.subr.bf16.mxu0 0
    %1245 = vmatpush1.bf16.msra.mxu0 0
    %1246 = vmatprep.subr.bf16.mxu0 0
    %1247 = vmatpush1.bf16.msra.mxu0 0
    %1248 = vmatprep.subr.bf16.mxu0 0
    %1249 = vmatpush1.bf16.msra.mxu0 0
    %1250 = vmatprep.subr.bf16.mxu0 0
    %1251 = vmatpush1.bf16.msra.mxu0 0
    %1252 = vmatprep.subr.bf16.mxu0 0
    %1253 = vmatpush1.bf16.msra.mxu0 0
    %1254 = vmatprep.mubr.bf16.mxu0 0
    %1255 = vmatmul.mubr.bf16.gmra.mrb[0].mxu0 %v1220
    %v1256 = vpop.f32.mrb[0].mxu0
    %v1257 = vadd.f32 0.0, %v1256
    %v1258 = vpop.f32.mrb[0].mxu0
    %v1259 = vpop.f32.mrb[0].mxu0
    %v1260 = vpop.f32.mrb[0].mxu0
    %1261 = vdwg.mxu0
    %v1262 = vadd.f32 %v1211, %v1257
    %v1263 = vld [vmem:[%s374] sm:$0xf]
    %v1264 = vunpack.c.h.b16 %v949
    %v1265 = vunpack.c.h.b16 %v950
    %v1266 = vpack.c.b16 %v1265, %v1264
    %1267 = vrot.lane.b32.xlu0 %v1166, 127
    %v1268 = vpop.permute.xlu0 %1267
    %1269 = vrot.lane.b32.xlu0 %v1266, 127
    %v1270 = vpop.permute.xlu0 %1269
    %v1271 = vsel %vm168, %v1268, %v1270
    %v1274 = vsel %vm66, %v1263, 0
    %1276 = vmatprep.subr.bf16.mxu0 0
    %1277 = vmatpush1.bf16.msra.mxu0 %v1271
    %1278 = vmatprep.subr.bf16.mxu0 0
    %1279 = vmatpush1.bf16.msra.mxu0 0
    %1280 = vmatprep.subr.bf16.mxu0 0
    %1281 = vmatpush1.bf16.msra.mxu0 0
    %1282 = vmatprep.subr.bf16.mxu0 0
    %1283 = vmatpush1.bf16.msra.mxu0 0
    %1284 = vmatprep.subr.bf16.mxu0 0
    %1285 = vmatpush1.bf16.msra.mxu0 0
    %1286 = vmatprep.subr.bf16.mxu0 0
    %1287 = vmatpush1.bf16.msra.mxu0 0
    %1288 = vmatprep.subr.bf16.mxu0 0
    %1289 = vmatpush1.bf16.msra.mxu0 0
    %1290 = vmatprep.subr.bf16.mxu0 0
    %1291 = vmatpush1.bf16.msra.mxu0 0
    %1292 = vmatprep.subr.bf16.mxu0 0
    %1293 = vmatpush1.bf16.msra.mxu0 0
    %1294 = vmatprep.subr.bf16.mxu0 0
    %1295 = vmatpush1.bf16.msra.mxu0 0
    %1296 = vmatprep.subr.bf16.mxu0 0
    %1297 = vmatpush1.bf16.msra.mxu0 0
    %1298 = vmatprep.subr.bf16.mxu0 0
    %1299 = vmatpush1.bf16.msra.mxu0 0
    %1300 = vmatprep.subr.bf16.mxu0 0
    %1301 = vmatpush1.bf16.msra.mxu0 0
    %1302 = vmatprep.subr.bf16.mxu0 0
    %1303 = vmatpush1.bf16.msra.mxu0 0
    %1304 = vmatprep.subr.bf16.mxu0 0
    %1305 = vmatpush1.bf16.msra.mxu0 0
    %1306 = vmatprep.subr.bf16.mxu0 0
    %1307 = vmatpush1.bf16.msra.mxu0 0
    %1308 = vmatprep.mubr.bf16.mxu0 0
    %1309 = vmatmul.mubr.bf16.gmra.mrb[0].mxu0 %v1274
    %v1310 = vpop.f32.mrb[0].mxu0
    %v1311 = vadd.f32 0.0, %v1310
    %v1312 = vpop.f32.mrb[0].mxu0
    %v1313 = vpop.f32.mrb[0].mxu0
    %v1314 = vpop.f32.mrb[0].mxu0
    %1315 = vdwg.mxu0
    %v1316 = vadd.f32 %v1262, %v1311
    %v1317 = vld [vmem:[%s429] sm:$0xf]
    %v1318 = vunpack.c.h.b16 %v951
    %v1319 = vunpack.c.h.b16 %v952
    %v1320 = vpack.c.b16 %v1319, %v1318
    %1321 = vrot.lane.b32.xlu0 %v1217, 127
    %v1322 = vpop.permute.xlu0 %1321
    %1323 = vrot.lane.b32.xlu0 %v1320, 127
    %v1324 = vpop.permute.xlu0 %1323
    %v1325 = vsel %vm168, %v1322, %v1324
    %v1328 = vsel %vm66, %v1317, 0
    %1330 = vmatprep.subr.bf16.mxu0 0
    %1331 = vmatpush1.bf16.msra.mxu0 %v1325
    %1332 = vmatprep.subr.bf16.mxu0 0
    %1333 = vmatpush1.bf16.msra.mxu0 0
    %1334 = vmatprep.subr.bf16.mxu0 0
    %1335 = vmatpush1.bf16.msra.mxu0 0
    %1336 = vmatprep.subr.bf16.mxu0 0
    %1337 = vmatpush1.bf16.msra.mxu0 0
    %1338 = vmatprep.subr.bf16.mxu0 0
    %1339 = vmatpush1.bf16.msra.mxu0 0
    %1340 = vmatprep.subr.bf16.mxu0 0
    %1341 = vmatpush1.bf16.msra.mxu0 0
    %1342 = vmatprep.subr.bf16.mxu0 0
    %1343 = vmatpush1.bf16.msra.mxu0 0
    %1344 = vmatprep.subr.bf16.mxu0 0
    %1345 = vmatpush1.bf16.msra.mxu0 0
    %1346 = vmatprep.subr.bf16.mxu0 0
    %1347 = vmatpush1.bf16.msra.mxu0 0
    %1348 = vmatprep.subr.bf16.mxu0 0
    %1349 = vmatpush1.bf16.msra.mxu0 0
    %1350 = vmatprep.subr.bf16.mxu0 0
    %1351 = vmatpush1.bf16.msra.mxu0 0
    %1352 = vmatprep.subr.bf16.mxu0 0
    %1353 = vmatpush1.bf16.msra.mxu0 0
    %1354 = vmatprep.subr.bf16.mxu0 0
    %1355 = vmatpush1.bf16.msra.mxu0 0
    %1356 = vmatprep.subr.bf16.mxu0 0
    %1357 = vmatpush1.bf16.msra.mxu0 0
    %1358 = vmatprep.subr.bf16.mxu0 0
    %1359 = vmatpush1.bf16.msra.mxu0 0
    %1360 = vmatprep.subr.bf16.mxu0 0
    %1361 = vmatpush1.bf16.msra.mxu0 0
    %1362 = vmatprep.mubr.bf16.mxu0 0
    %1363 = vmatmul.mubr.bf16.gmra.mrb[0].mxu0 %v1328
    %v1364 = vpop.f32.mrb[0].mxu0
    %v1365 = vadd.f32 0.0, %v1364
    %v1366 = vpop.f32.mrb[0].mxu0
    %v1367 = vpop.f32.mrb[0].mxu0
    %v1368 = vpop.f32.mrb[0].mxu0
    %1369 = vdwg.mxu0
    %v1370 = vadd.f32 %v1316, %v1365
    %v1371 = vld [vmem:[%s484] sm:$0xf]
    %1372 = vrot.lane.b32.xlu0 %v1008, 120
    %v1373 = vpop.permute.xlu0 %1372
    %1374 = vrot.lane.b32.xlu0 %v1056, 120
    %v1375 = vpop.permute.xlu0 %1374
    %v1376 = vsel %vm490, %v1373, %v1375
    %v1379 = vsel %vm66, %v1371, 0
    %1381 = vmatprep.subr.bf16.mxu0 0
    %1382 = vmatpush1.bf16.msra.mxu0 %v1376
    %1383 = vmatprep.subr.bf16.mxu0 0
    %1384 = vmatpush1.bf16.msra.mxu0 0
    %1385 = vmatprep.subr.bf16.mxu0 0
    %1386 = vmatpush1.bf16.msra.mxu0 0
    %1387 = vmatprep.subr.bf16.mxu0 0
    %1388 = vmatpush1.bf16.msra.mxu0 0
    %1389 = vmatprep.subr.bf16.mxu0 0
    %1390 = vmatpush1.bf16.msra.mxu0 0
    %1391 = vmatprep.subr.bf16.mxu0 0
    %1392 = vmatpush1.bf16.msra.mxu0 0
    %1393 = vmatprep.subr.bf16.mxu0 0
    %1394 = vmatpush1.bf16.msra.mxu0 0
    %1395 = vmatprep.subr.bf16.mxu0 0
    %1396 = vmatpush1.bf16.msra.mxu0 0
    %1397 = vmatprep.subr.bf16.mxu0 0
    %1398 = vmatpush1.bf16.msra.mxu0 0
    %1399 = vmatprep.subr.bf16.mxu0 0
    %1400 = vmatpush1.bf16.msra.mxu0 0
    %1401 = vmatprep.subr.bf16.mxu0 0
    %1402 = vmatpush1.bf16.msra.mxu0 0
    %1403 = vmatprep.subr.bf16.mxu0 0
    %1404 = vmatpush1.bf16.msra.mxu0 0
    %1405 = vmatprep.subr.bf16.mxu0 0
    %1406 = vmatpush1.bf16.msra.mxu0 0
    %1407 = vmatprep.subr.bf16.mxu0 0
    %1408 = vmatpush1.bf16.msra.mxu0 0
    %1409 = vmatprep.subr.bf16.mxu0 0
    %1410 = vmatpush1.bf16.msra.mxu0 0
    %1411 = vmatprep.subr.bf16.mxu0 0
    %1412 = vmatpush1.bf16.msra.mxu0 0
    %1413 = vmatprep.mubr.bf16.mxu0 0
    %1414 = vmatmul.mubr.bf16.gmra.mrb[0].mxu0 %v1379
    %v1415 = vpop.f32.mrb[0].mxu0
    %v1416 = vadd.f32 0.0, %v1415
    %v1417 = vpop.f32.mrb[0].mxu0
    %v1418 = vpop.f32.mrb[0].mxu0
    %v1419 = vpop.f32.mrb[0].mxu0
    %1420 = vdwg.mxu0
    %v1421 = vadd.f32 %v1370, %v1416
    %v1422 = vld [vmem:[%s537] sm:$0xf]
    %1423 = vrot.lane.b32.xlu0 %v959, 120
    %v1424 = vpop.permute.xlu0 %1423
    %1425 = vrot.lane.b32.xlu0 %v1110, 120
    %v1426 = vpop.permute.xlu0 %1425
    %v1427 = vsel %vm490, %v1424, %v1426
    %v1430 = vsel %vm66, %v1422, 0
    %1432 = vmatprep.subr.bf16.mxu0 0
    %1433 = vmatpush1.bf16.msra.mxu0 %v1427
    %1434 = vmatprep.subr.bf16.mxu0 0
    %1435 = vmatpush1.bf16.msra.mxu0 0
    %1436 = vmatprep.subr.bf16.mxu0 0
    %1437 = vmatpush1.bf16.msra.mxu0 0
    %1438 = vmatprep.subr.bf16.mxu0 0
    %1439 = vmatpush1.bf16.msra.mxu0 0
    %1440 = vmatprep.subr.bf16.mxu0 0
    %1441 = vmatpush1.bf16.msra.mxu0 0
    %1442 = vmatprep.subr.bf16.mxu0 0
    %1443 = vmatpush1.bf16.msra.mxu0 0
    %1444 = vmatprep.subr.bf16.mxu0 0
    %1445 = vmatpush1.bf16.msra.mxu0 0
    %1446 = vmatprep.subr.bf16.mxu0 0
    %1447 = vmatpush1.bf16.msra.mxu0 0
    %1448 = vmatprep.subr.bf16.mxu0 0
    %1449 = vmatpush1.bf16.msra.mxu0 0
    %1450 = vmatprep.subr.bf16.mxu0 0
    %1451 = vmatpush1.bf16.msra.mxu0 0
    %1452 = vmatprep.subr.bf16.mxu0 0
    %1453 = vmatpush1.bf16.msra.mxu0 0
    %1454 = vmatprep.subr.bf16.mxu0 0
    %1455 = vmatpush1.bf16.msra.mxu0 0
    %1456 = vmatprep.subr.bf16.mxu0 0
    %1457 = vmatpush1.bf16.msra.mxu0 0
    %1458 = vmatprep.subr.bf16.mxu0 0
    %1459 = vmatpush1.bf16.msra.mxu0 0
    %1460 = vmatprep.subr.bf16.mxu0 0
    %1461 = vmatpush1.bf16.msra.mxu0 0
    %1462 = vmatprep.subr.bf16.mxu0 0
    %1463 = vmatpush1.bf16.msra.mxu0 0
    %1464 = vmatprep.mubr.bf16.mxu0 0
    %1465 = vmatmul.mubr.bf16.gmra.mrb[0].mxu0 %v1430
    %v1466 = vpop.f32.mrb[0].mxu0
    %v1467 = vadd.f32 0.0, %v1466
    %v1468 = vpop.f32.mrb[0].mxu0
    %v1469 = vpop.f32.mrb[0].mxu0
    %v1470 = vpop.f32.mrb[0].mxu0
    %1471 = vdwg.mxu0
    %v1472 = vadd.f32 %v1421, %v1467
    %v1473 = vld [vmem:[%s589] sm:$0xf]
    %1474 = vrot.lane.b32.xlu0 %v1008, 119
    %v1475 = vpop.permute.xlu0 %1474
    %1476 = vrot.lane.b32.xlu0 %v1056, 119
    %v1477 = vpop.permute.xlu0 %1476
    %v1478 = vsel %vm595, %v1475, %v1477
    %v1481 = vsel %vm66, %v1473, 0
    %1483 = vmatprep.subr.bf16.mxu0 0
    %1484 = vmatpush1.bf16.msra.mxu0 %v1478
    %1485 = vmatprep.subr.bf16.mxu0 0
    %1486 = vmatpush1.bf16.msra.mxu0 0
    %1487 = vmatprep.subr.bf16.mxu0 0
    %1488 = vmatpush1.bf16.msra.mxu0 0
    %1489 = vmatprep.subr.bf16.mxu0 0
    %1490 = vmatpush1.bf16.msra.mxu0 0
    %1491 = vmatprep.subr.bf16.mxu0 0
    %1492 = vmatpush1.bf16.msra.mxu0 0
    %1493 = vmatprep.subr.bf16.mxu0 0
    %1494 = vmatpush1.bf16.msra.mxu0 0
    %1495 = vmatprep.subr.bf16.mxu0 0
    %1496 = vmatpush1.bf16.msra.mxu0 0
    %1497 = vmatprep.subr.bf16.mxu0 0
    %1498 = vmatpush1.bf16.msra.mxu0 0
    %1499 = vmatprep.subr.bf16.mxu0 0
    %1500 = vmatpush1.bf16.msra.mxu0 0
    %1501 = vmatprep.subr.bf16.mxu0 0
    %1502 = vmatpush1.bf16.msra.mxu0 0
    %1503 = vmatprep.subr.bf16.mxu0 0
    %1504 = vmatpush1.bf16.msra.mxu0 0
    %1505 = vmatprep.subr.bf16.mxu0 0
    %1506 = vmatpush1.bf16.msra.mxu0 0
    %1507 = vmatprep.subr.bf16.mxu0 0
    %1508 = vmatpush1.bf16.msra.mxu0 0
    %1509 = vmatprep.subr.bf16.mxu0 0
    %1510 = vmatpush1.bf16.msra.mxu0 0
    %1511 = vmatprep.subr.bf16.mxu0 0
    %1512 = vmatpush1.bf16.msra.mxu0 0
    %1513 = vmatprep.subr.bf16.mxu0 0
    %1514 = vmatpush1.bf16.msra.mxu0 0
    %1515 = vmatprep.mubr.bf16.mxu0 0
    %1516 = vmatmul.mubr.bf16.gmra.mrb[0].mxu0 %v1481
    %v1517 = vpop.f32.mrb[0].mxu0
    %v1518 = vadd.f32 0.0, %v1517
    %v1519 = vpop.f32.mrb[0].mxu0
    %v1520 = vpop.f32.mrb[0].mxu0
    %v1521 = vpop.f32.mrb[0].mxu0
    %1522 = vdwg.mxu0
    %v1523 = vadd.f32 %v1472, %v1518
    %v1524 = vld [vmem:[%s642] sm:$0xf]
    %1525 = vrot.lane.b32.xlu0 %v959, 119
    %v1526 = vpop.permute.xlu0 %1525
    %1527 = vrot.lane.b32.xlu0 %v1110, 119
    %v1528 = vpop.permute.xlu0 %1527
    %v1529 = vsel %vm595, %v1526, %v1528
    %v1532 = vsel %vm66, %v1524, 0
    %1534 = vmatprep.subr.bf16.mxu0 0
    %1535 = vmatpush1.bf16.msra.mxu0 %v1529
    %1536 = vmatprep.subr.bf16.mxu0 0
    %1537 = vmatpush1.bf16.msra.mxu0 0
    %1538 = vmatprep.subr.bf16.mxu0 0
    %1539 = vmatpush1.bf16.msra.mxu0 0
    %1540 = vmatprep.subr.bf16.mxu0 0
    %1541 = vmatpush1.bf16.msra.mxu0 0
    %1542 = vmatprep.subr.bf16.mxu0 0
    %1543 = vmatpush1.bf16.msra.mxu0 0
    %1544 = vmatprep.subr.bf16.mxu0 0
    %1545 = vmatpush1.bf16.msra.mxu0 0
    %1546 = vmatprep.subr.bf16.mxu0 0
    %1547 = vmatpush1.bf16.msra.mxu0 0
    %1548 = vmatprep.subr.bf16.mxu0 0
    %1549 = vmatpush1.bf16.msra.mxu0 0
    %1550 = vmatprep.subr.bf16.mxu0 0
    %1551 = vmatpush1.bf16.msra.mxu0 0
    %1552 = vmatprep.subr.bf16.mxu0 0
    %1553 = vmatpush1.bf16.msra.mxu0 0
    %1554 = vmatprep.subr.bf16.mxu0 0
    %1555 = vmatpush1.bf16.msra.mxu0 0
    %1556 = vmatprep.subr.bf16.mxu0 0
    %1557 = vmatpush1.bf16.msra.mxu0 0
    %1558 = vmatprep.subr.bf16.mxu0 0
    %1559 = vmatpush1.bf16.msra.mxu0 0
    %1560 = vmatprep.subr.bf16.mxu0 0
    %1561 = vmatpush1.bf16.msra.mxu0 0
    %1562 = vmatprep.subr.bf16.mxu0 0
    %1563 = vmatpush1.bf16.msra.mxu0 0
    %1564 = vmatprep.subr.bf16.mxu0 0
    %1565 = vmatpush1.bf16.msra.mxu0 0
    %1566 = vmatprep.mubr.bf16.mxu0 0
    %1567 = vmatmul.mubr.bf16.gmra.mrb[0].mxu0 %v1532
    %v1568 = vpop.f32.mrb[0].mxu0
    %v1569 = vadd.f32 0.0, %v1568
    %v1570 = vpop.f32.mrb[0].mxu0
    %v1571 = vpop.f32.mrb[0].mxu0
    %v1572 = vpop.f32.mrb[0].mxu0
    %1573 = vdwg.mxu0
    %v1574 = vadd.f32 %v1523, %v1569
    %v1575 = vld [vmem:[%s694] sm:$0xf]
    %1576 = vrot.lane.b32.xlu0 %v1166, 120
    %v1577 = vpop.permute.xlu0 %1576
    %1578 = vrot.lane.b32.xlu0 %v1266, 120
    %v1579 = vpop.permute.xlu0 %1578
    %v1580 = vsel %vm490, %v1577, %v1579
    %v1583 = vsel %vm66, %v1575, 0
    %1585 = vmatprep.subr.bf16.mxu0 0
    %1586 = vmatpush1.bf16.msra.mxu0 %v1580
    %1587 = vmatprep.subr.bf16.mxu0 0
    %1588 = vmatpush1.bf16.msra.mxu0 0
    %1589 = vmatprep.subr.bf16.mxu0 0
    %1590 = vmatpush1.bf16.msra.mxu0 0
    %1591 = vmatprep.subr.bf16.mxu0 0
    %1592 = vmatpush1.bf16.msra.mxu0 0
    %1593 = vmatprep.subr.bf16.mxu0 0
    %1594 = vmatpush1.bf16.msra.mxu0 0
    %1595 = vmatprep.subr.bf16.mxu0 0
    %1596 = vmatpush1.bf16.msra.mxu0 0
    %1597 = vmatprep.subr.bf16.mxu0 0
    %1598 = vmatpush1.bf16.msra.mxu0 0
    %1599 = vmatprep.subr.bf16.mxu0 0
    %1600 = vmatpush1.bf16.msra.mxu0 0
    %1601 = vmatprep.subr.bf16.mxu0 0
    %1602 = vmatpush1.bf16.msra.mxu0 0
    %1603 = vmatprep.subr.bf16.mxu0 0
    %1604 = vmatpush1.bf16.msra.mxu0 0
    %1605 = vmatprep.subr.bf16.mxu0 0
    %1606 = vmatpush1.bf16.msra.mxu0 0
    %1607 = vmatprep.subr.bf16.mxu0 0
    %1608 = vmatpush1.bf16.msra.mxu0 0
    %1609 = vmatprep.subr.bf16.mxu0 0
    %1610 = vmatpush1.bf16.msra.mxu0 0
    %1611 = vmatprep.subr.bf16.mxu0 0
    %1612 = vmatpush1.bf16.msra.mxu0 0
    %1613 = vmatprep.subr.bf16.mxu0 0
    %1614 = vmatpush1.bf16.msra.mxu0 0
    %1615 = vmatprep.subr.bf16.mxu0 0
    %1616 = vmatpush1.bf16.msra.mxu0 0
    %1617 = vmatprep.mubr.bf16.mxu0 0
    %1618 = vmatmul.mubr.bf16.gmra.mrb[0].mxu0 %v1583
    %v1619 = vpop.f32.mrb[0].mxu0
    %v1620 = vadd.f32 0.0, %v1619
    %v1621 = vpop.f32.mrb[0].mxu0
    %v1622 = vpop.f32.mrb[0].mxu0
    %v1623 = vpop.f32.mrb[0].mxu0
    %1624 = vdwg.mxu0
    %v1625 = vadd.f32 %v1574, %v1620
    %v1626 = vld [vmem:[%s746] sm:$0xf]
    %1627 = vrot.lane.b32.xlu0 %v1217, 120
    %v1628 = vpop.permute.xlu0 %1627
    %1629 = vrot.lane.b32.xlu0 %v1320, 120
    %v1630 = vpop.permute.xlu0 %1629
    %v1631 = vsel %vm490, %v1628, %v1630
    %v1634 = vsel %vm66, %v1626, 0
    %1636 = vmatprep.subr.bf16.mxu0 0
    %1637 = vmatpush1.bf16.msra.mxu0 %v1631
    %1638 = vmatprep.subr.bf16.mxu0 0
    %1639 = vmatpush1.bf16.msra.mxu0 0
    %1640 = vmatprep.subr.bf16.mxu0 0
    %1641 = vmatpush1.bf16.msra.mxu0 0
    %1642 = vmatprep.subr.bf16.mxu0 0
    %1643 = vmatpush1.bf16.msra.mxu0 0
    %1644 = vmatprep.subr.bf16.mxu0 0
    %1645 = vmatpush1.bf16.msra.mxu0 0
    %1646 = vmatprep.subr.bf16.mxu0 0
    %1647 = vmatpush1.bf16.msra.mxu0 0
    %1648 = vmatprep.subr.bf16.mxu0 0
    %1649 = vmatpush1.bf16.msra.mxu0 0
    %1650 = vmatprep.subr.bf16.mxu0 0
    %1651 = vmatpush1.bf16.msra.mxu0 0
    %1652 = vmatprep.subr.bf16.mxu0 0
    %1653 = vmatpush1.bf16.msra.mxu0 0
    %1654 = vmatprep.subr.bf16.mxu0 0
    %1655 = vmatpush1.bf16.msra.mxu0 0
    %1656 = vmatprep.subr.bf16.mxu0 0
    %1657 = vmatpush1.bf16.msra.mxu0 0
    %1658 = vmatprep.subr.bf16.mxu0 0
    %1659 = vmatpush1.bf16.msra.mxu0 0
    %1660 = vmatprep.subr.bf16.mxu0 0
    %1661 = vmatpush1.bf16.msra.mxu0 0
    %1662 = vmatprep.subr.bf16.mxu0 0
    %1663 = vmatpush1.bf16.msra.mxu0 0
    %1664 = vmatprep.subr.bf16.mxu0 0
    %1665 = vmatpush1.bf16.msra.mxu0 0
    %1666 = vmatprep.subr.bf16.mxu0 0
    %1667 = vmatpush1.bf16.msra.mxu0 0
    %1668 = vmatprep.mubr.bf16.mxu0 0
    %1669 = vmatmul.mubr.bf16.gmra.mrb[0].mxu0 %v1634
    %v1670 = vpop.f32.mrb[0].mxu0
    %v1671 = vadd.f32 0.0, %v1670
    %v1672 = vpop.f32.mrb[0].mxu0
    %v1673 = vpop.f32.mrb[0].mxu0
    %v1674 = vpop.f32.mrb[0].mxu0
    %1675 = vdwg.mxu0
    %v1676 = vadd.f32 %v1625, %v1671
    %v1677 = vld [vmem:[%s798] sm:$0xf]
    %1678 = vrot.lane.b32.xlu0 %v1166, 119
    %v1679 = vpop.permute.xlu0 %1678
    %1680 = vrot.lane.b32.xlu0 %v1266, 119
    %v1681 = vpop.permute.xlu0 %1680
    %v1682 = vsel %vm595, %v1679, %v1681
    %v1685 = vsel %vm66, %v1677, 0
    %1687 = vmatprep.subr.bf16.mxu0 0
    %1688 = vmatpush1.bf16.msra.mxu0 %v1682
    %1689 = vmatprep.subr.bf16.mxu0 0
    %1690 = vmatpush1.bf16.msra.mxu0 0
    %1691 = vmatprep.subr.bf16.mxu0 0
    %1692 = vmatpush1.bf16.msra.mxu0 0
    %1693 = vmatprep.subr.bf16.mxu0 0
    %1694 = vmatpush1.bf16.msra.mxu0 0
    %1695 = vmatprep.subr.bf16.mxu0 0
    %1696 = vmatpush1.bf16.msra.mxu0 0
    %1697 = vmatprep.subr.bf16.mxu0 0
    %1698 = vmatpush1.bf16.msra.mxu0 0
    %1699 = vmatprep.subr.bf16.mxu0 0
    %1700 = vmatpush1.bf16.msra.mxu0 0
    %1701 = vmatprep.subr.bf16.mxu0 0
    %1702 = vmatpush1.bf16.msra.mxu0 0
    %1703 = vmatprep.subr.bf16.mxu0 0
    %1704 = vmatpush1.bf16.msra.mxu0 0
    %1705 = vmatprep.subr.bf16.mxu0 0
    %1706 = vmatpush1.bf16.msra.mxu0 0
    %1707 = vmatprep.subr.bf16.mxu0 0
    %1708 = vmatpush1.bf16.msra.mxu0 0
    %1709 = vmatprep.subr.bf16.mxu0 0
    %1710 = vmatpush1.bf16.msra.mxu0 0
    %1711 = vmatprep.subr.bf16.mxu0 0
    %1712 = vmatpush1.bf16.msra.mxu0 0
    %1713 = vmatprep.subr.bf16.mxu0 0
    %1714 = vmatpush1.bf16.msra.mxu0 0
    %1715 = vmatprep.subr.bf16.mxu0 0
    %1716 = vmatpush1.bf16.msra.mxu0 0
    %1717 = vmatprep.subr.bf16.mxu0 0
    %1718 = vmatpush1.bf16.msra.mxu0 0
    %1719 = vmatprep.mubr.bf16.mxu0 0
    %1720 = vmatmul.mubr.bf16.gmra.mrb[0].mxu0 %v1685
    %v1721 = vpop.f32.mrb[0].mxu0
    %v1722 = vadd.f32 0.0, %v1721
    %v1723 = vpop.f32.mrb[0].mxu0
    %v1724 = vpop.f32.mrb[0].mxu0
    %v1725 = vpop.f32.mrb[0].mxu0
    %1726 = vdwg.mxu0
    %v1727 = vadd.f32 %v1676, %v1722
    %v1728 = vld [vmem:[%s850] sm:$0xf]
    %1729 = vrot.lane.b32.xlu0 %v1217, 119
    %v1730 = vpop.permute.xlu0 %1729
    %1731 = vrot.lane.b32.xlu0 %v1320, 119
    %v1732 = vpop.permute.xlu0 %1731
    %v1733 = vsel %vm595, %v1730, %v1732
    %v1736 = vsel %vm66, %v1728, 0
    %1738 = vmatprep.subr.bf16.mxu0 0
    %1739 = vmatpush1.bf16.msra.mxu0 %v1733
    %1740 = vmatprep.subr.bf16.mxu0 0
    %1741 = vmatpush1.bf16.msra.mxu0 0
    %1742 = vmatprep.subr.bf16.mxu0 0
    %1743 = vmatpush1.bf16.msra.mxu0 0
    %1744 = vmatprep.subr.bf16.mxu0 0
    %1745 = vmatpush1.bf16.msra.mxu0 0
    %1746 = vmatprep.subr.bf16.mxu0 0
    %1747 = vmatpush1.bf16.msra.mxu0 0
    %1748 = vmatprep.subr.bf16.mxu0 0
    %1749 = vmatpush1.bf16.msra.mxu0 0
    %1750 = vmatprep.subr.bf16.mxu0 0
    %1751 = vmatpush1.bf16.msra.mxu0 0
    %1752 = vmatprep.subr.bf16.mxu0 0
    %1753 = vmatpush1.bf16.msra.mxu0 0
    %1754 = vmatprep.subr.bf16.mxu0 0
    %1755 = vmatpush1.bf16.msra.mxu0 0
    %1756 = vmatprep.subr.bf16.mxu0 0
    %1757 = vmatpush1.bf16.msra.mxu0 0
    %1758 = vmatprep.subr.bf16.mxu0 0
    %1759 = vmatpush1.bf16.msra.mxu0 0
    %1760 = vmatprep.subr.bf16.mxu0 0
    %1761 = vmatpush1.bf16.msra.mxu0 0
    %1762 = vmatprep.subr.bf16.mxu0 0
    %1763 = vmatpush1.bf16.msra.mxu0 0
    %1764 = vmatprep.subr.bf16.mxu0 0
    %1765 = vmatpush1.bf16.msra.mxu0 0
    %1766 = vmatprep.subr.bf16.mxu0 0
    %1767 = vmatpush1.bf16.msra.mxu0 0
    %1768 = vmatprep.subr.bf16.mxu0 0
    %1769 = vmatpush1.bf16.msra.mxu0 0
    %1770 = vmatprep.mubr.bf16.mxu0 0
    %1771 = vmatmul.mubr.bf16.gmra.mrb[0].mxu0 %v1736
    %v1772 = vpop.f32.mrb[0].mxu0
    %v1773 = vadd.f32 0.0, %v1772
    %v1774 = vpop.f32.mrb[0].mxu0
    %v1775 = vpop.f32.mrb[0].mxu0
    %v1776 = vpop.f32.mrb[0].mxu0
    %1777 = vdwg.mxu0
    %v1778 = vadd.f32 %v1727, %v1773
    %v1779 = vmul.f32 %v1778, %v906
    %1780 = vadd.xlane.f32.xlu0 %v1779
    %v1781 = vpop.xlane.xlu0 %1780
    %v1782 = vmul.f32 %v1781, 0.020408163
    %v1783 = vsub.f32 %v1778, %v1782
    %v1784 = vmul.f32 %v1783, %v906
    %v1785 = vmul.f32 %v1784, %v1784
    %1786 = vadd.xlane.f32.xlu0 %v1785
    %v1787 = vpop.xlane.xlu0 %1786
    %v1788 = vmul.f32 %v1787, 0.020408163
    %v1789 = vadd.f32 %v1788, 1e-05
    %v1790 = vrsqrt.pop %v1789
    %v1791 = vmul.f32 %v48, %v1790
    %v1792 = vmul.f32 %v1782, %v1791
    %1794 = vrot.lane.b32.xlu0 %v1792, 1
    %v1795 = vpop.permute.xlu0 %1794
    %v1797 = vsub.f32 %v48, %v1795
    %1799 = vset.pattern.permute.xlu0 0
    %1800 = vperm.xlu0 %1799, %v1791
    %v1801 = vpop.permute.xlu0 %1800
    %v1803 = vmul.f32 %v1778, %v1801
    %1805 = vset.pattern.permute.xlu0 1
    %1806 = vperm.xlu0 %1805, %v1797
    %v1807 = vpop.permute.xlu0 %1806
    %v1809 = vadd.f32 %v1803, %v1807
    %vm1810 = vcmp.gt.f32.partialorder %v1809, 0.0
    %v1811 = vmul.f32 %v1809, 0.2
    %v1812 = vsel %vm1810, %v1809, %v1811
    %v1813 = vpack.c.bf16 %v1812, %v1812
    %s1814 = scalar_lea.vmem [#allocation7], 4
    %1815 = vst [vmem:[%s1814] sm:$0xf] %v1813
    // Predicated region
    $region26: #{tpu_custom_call.1} parent=1 // pred_check
      _
    $region27: #{tpu_custom_call.1} parent=1 // pred_check_branch
      %1817 = sbr.rel (0) target = $region29
    $region28: #{tpu_custom_call.1} parent=1 // pred_region
      %s1819 = ssub.s32 128, 128
      %1820 = vsyncadd [#allocation4], %s1819
      %s1821 = sshll.u32 [#allocation7], 4
      %s1822 = int_to_ptr.vmem [resolvable:$true] %s1821
      %1827 = dma.vmem_to_hbm [thread:$0]  %s1822, 128, %s4, [#allocation4], 64, 64, 4
    $region29: #{tpu_custom_call.1} parent=1 // pred_fallthru
      _
    // Predicated region
    $region30: #{tpu_custom_call.1} parent=1 // pred_check
      _
    $region31: #{tpu_custom_call.1} parent=1 // pred_check_branch
      %1829 = sbr.rel (0) target = $region33
    $region32: #{tpu_custom_call.1} parent=1 // pred_region
      %1830 = dma.done [#allocation4], 128
    $region33: #{tpu_custom_call.1} parent=1 // pred_fallthru
      _
    %1831 = vsyncpa [#allocation3], 1
    %1832 = vsyncpa [#allocation6], 1
    %1833 = vsyncpa [#allocation4], 1

</llo_original>
